<compile_context>
chip_gen: v6e
topology: v6e:2x2x1
jax: 0.10.0
libtpu: 0.0.40
codegen_flags: <defaults>
</compile_context>

<pallas_src>
import jax
import jax.numpy as jnp
import numpy as np
from jax import lax
from jax.experimental import pallas as pl
from jax.experimental.pallas import tpu as pltpu  # noqa: F401  (TPU backend)

EPS = 1e-5


# ------------------------------ fused Pallas kernel ------------------------ #

def fused_forward(patchesT, wc_full, gamma, beta, whT, bl, onehot,
                  *, n_batch, cout, hw):
    """conv + BN(train) + sigmoid + (pool-folded) linear + log_softmax + nll."""
    Kp, M = patchesT.shape
    num_classes = whT.shape[0]
    assert M == n_batch * hw and whT.shape[1] == cout * hw

    def kernel(pT_ref, wc_ref, g_ref, b_ref, wh_ref, bl_ref, oh_ref, loss_ref):
        # Conv as matmul: [Cout, Kp] @ [Kp, N*H*W] -> lane-dense [Cout, M].
        out = jnp.dot(wc_ref[...], pT_ref[...],
                      preferred_element_type=jnp.float32)

        # BatchNorm2d train-mode stats over the N*H*W lanes of each channel,
        # one pass (var = E[x^2] - E[x]^2), folded into one per-channel FMA.
        inv_m = 1.0 / M
        mean = jnp.sum(out, axis=1, keepdims=True) * inv_m          # [Cout, 1]
        ex2 = jnp.sum(out * out, axis=1, keepdims=True) * inv_m     # [Cout, 1]
        var = ex2 - mean * mean
        s = g_ref[...] * lax.rsqrt(var + EPS)                       # [Cout, 1]
        t = b_ref[...] - mean * s                                   # [Cout, 1]
        y = jax.nn.sigmoid(out * s + t)                             # [Cout, M]

        # Per-batch-row head.  Row n of the flattened activation is assembled
        # as a VALUE (lane-dense concat of 128-aligned slices; everything
        # stays in vregs — no scratch store->reload), and its logits matmul is
        # issued immediately.  avg_pool2d(2,2) is folded exactly into whT.
        total = jnp.zeros((1, 1), jnp.float32)
        for n in range(n_batch):
            act_n = jnp.concatenate(
                [y[c:c + 1, n * hw:(n + 1) * hw] for c in range(cout)],
                axis=1)                                             # [1, Cout*HW]
            logits = lax.dot_general(
                act_n, wh_ref[...], (((1,), (1,)), ((), ())),
                preferred_element_type=jnp.float32) + bl_ref[...]   # [1, C]
            m = jnp.max(logits, axis=-1, keepdims=True)
            lse = jnp.log(jnp.sum(jnp.exp(logits - m), axis=-1,
                                  keepdims=True)) + m
            logp = logits - lse
            total = total - jnp.sum(oh_ref[n:n + 1, :] * logp,
                                    axis=-1, keepdims=True)
        # (1,1) output still pads to an (8,128) tile; one masked store only.
        loss_ref[...] = total * (1.0 / n_batch)

    # Gridless call: each operand is a whole-array VMEM block; no pipelining,
    # hence no double-buffering.  Total VMEM footprint ~0.4 MiB.
    return pl.pallas_call(
        kernel,
        out_shape=jax.ShapeDtypeStruct((1, 1), jnp.float32),
    )(patchesT, wc_full, gamma, beta, whT, bl, onehot)


# ------------------------------ glue (layout prep) ------------------------- #

def build_patchesT(x, K, pad, Kp):
    """Transposed im2col [Kp, N*H*W]: rows ordered (cin, kh, kw), zero-padded
    to Kp; columns ordered (n, h, w).  One conv_general_dilated_patches HLO."""
    N, Cin, H, W = x.shape
    CKK = Cin * K * K
    patches = lax.conv_general_dilated_patches(
        x, filter_shape=(K, K), window_strides=(1, 1),
        padding=((pad, pad), (pad, pad)))          # [N, Cin*K*K, H, W]
    pT = patches.transpose(1, 0, 2, 3).reshape(CKK, N * H * W)
    return jnp.pad(pT, ((0, Kp - CKK), (0, 0)))


def torch_test_forward(x, y_true, params, K=5, pad=2):
    # x: [N, Cin, H, W] float32 (NCHW, like PyTorch); y_true: [N] int
    wc = params["conv_w"]                          # [Cout, Cin, K, K]
    gamma, beta = params["bn_g"], params["bn_b"]
    wl, bl = params["lin_w"], params["lin_b"]
    # NOTE: params["conv_b"] is intentionally unused — a per-channel constant
    # bias cancels exactly under train-mode BatchNorm (reference keeps it, and
    # the allclose check below validates the cancellation).

    N, Cin, H, W = x.shape
    Cout = wc.shape[0]
    num_classes = wl.shape[0]
    HW = H * W
    CKK = Cin * K * K
    Kp = ((CKK + 127) // 128) * 128                # contraction padded to 128

    patchesT = build_patchesT(x, K, pad, Kp)                        # [Kp, N*H*W]
    wc_full = jnp.pad(wc.reshape(Cout, CKK), ((0, 0), (0, Kp - CKK)))

    # Fold avg_pool2d(2,2) + flatten into a transposed, lane-dense head weight:
    # whT[k, c*HW + h*W + w] = 0.25 * wl[k, c*HpWp + (h//2)*Wp + (w//2)].
    Hp, Wp = H // 2, W // 2
    wl_r = wl.reshape(num_classes, Cout, Hp, Wp)
    whT = (0.25 * jnp.repeat(jnp.repeat(wl_r, 2, axis=2), 2, axis=3)
           ).reshape(num_classes, Cout * HW)                        # [10, 1536]

    onehot = jax.nn.one_hot(y_true, num_classes, dtype=jnp.float32)

    loss = fused_forward(
        patchesT, wc_full, gamma.reshape(Cout, 1), beta.reshape(Cout, 1),
        whT, bl.reshape(1, num_classes), onehot,
        n_batch=N, cout=Cout, hw=HW)
    return loss[0, 0]


# ------------------------------ pure-JAX reference ------------------------- #

def reference_forward(x, y_true, params):
    wc, bc = params["conv_w"], params["conv_b"]
    gamma, beta = params["bn_g"], params["bn_b"]
    wl, bl = params["lin_w"], params["lin_b"]
    out = lax.conv_general_dilated(
        x, wc, (1, 1), [(2, 2), (2, 2)],
        dimension_numbers=("NCHW", "OIHW", "NCHW"))
    out = out + bc.reshape(1, -1, 1, 1)
    mean = out.mean(axis=(0, 2, 3), keepdims=True)
    var = ((out - mean) ** 2).mean(axis=(0, 2, 3), keepdims=True)
    out = (out - mean) * lax.rsqrt(var + EPS)
    out = out * gamma.reshape(1, -1, 1, 1) + beta.reshape(1, -1, 1, 1)
    out = jax.nn.sigmoid(out)
    N, C, H, W = out.shape
    out = out.reshape(N, C, H // 2, 2, W // 2, 2).mean(axis=(3, 5))
    out = out.reshape(N, -1)
    logits = out @ wl.T + bl
    logp = jax.nn.log_softmax(logits, axis=-1)
    return -jnp.mean(logp[jnp.arange(N), y_true])


# ------------------------------------ main --------------------------------- #

if __name__ == "__main__":
    key = jax.random.PRNGKey(0)
    N, Cin, H = 2, 3, 16                   # small "input_shape" = 16
    Cout, K, num_classes = 6, 5, 10
    feat = (H // 2) ** 2 * Cout            # matches (input_shape // 2)**2 * 6

    ks = jax.random.split(key, 8)
    params = {
        "conv_w": jax.random.normal(ks[0], (Cout, Cin, K, K), jnp.float32) * 0.1,
        "conv_b": jax.random.normal(ks[1], (Cout,), jnp.float32) * 0.1,
        "bn_g": 1.0 + 0.1 * jax.random.normal(ks[2], (Cout,), jnp.float32),
        "bn_b": 0.1 * jax.random.normal(ks[3], (Cout,), jnp.float32),
        "lin_w": jax.random.normal(ks[4], (num_classes, feat), jnp.float32) * 0.05,
        "lin_b": jax.random.normal(ks[5], (num_classes,), jnp.float32) * 0.05,
    }
    x = jax.random.normal(ks[6], (N, Cin, H, H), jnp.float32)
    y_true = jax.random.randint(ks[7], (N,), 0, num_classes)

    fwd = jax.jit(torch_test_forward)
    loss = jax.block_until_ready(fwd(x, y_true, params))
    ref = reference_forward(x, y_true, params)
    assert bool(jnp.isfinite(loss))
    np.testing.assert_allclose(np.asarray(loss), np.asarray(ref),
                               rtol=1e-3, atol=1e-3)
    print("KERNEL_OK")
</pallas_src>

<mosaic_0001>
module attributes {stable_mosaic.version = 11 : i64} {
  func.func @kernel(%arg0: memref<128x512xf32, #tpu.memory_space<vmem>>, %arg1: memref<6x128xf32, #tpu.memory_space<vmem>>, %arg2: memref<6x1xf32, #tpu.memory_space<vmem>>, %arg3: memref<6x1xf32, #tpu.memory_space<vmem>>, %arg4: memref<10x1536xf32, #tpu.memory_space<vmem>>, %arg5: memref<1x10xf32, #tpu.memory_space<vmem>>, %arg6: memref<2x10xf32, #tpu.memory_space<vmem>>, %arg7: memref<1x1xf32, #tpu.memory_space<vmem>>) attributes {dimension_semantics = [], scalar_prefetch = 0 : i64, scratch_operands = 0 : i64, tpu.core_type = #tpu.core_type<tc>} {
    %c0 = arith.constant 0 : index
    %c0_0 = arith.constant 0 : index
    %0 = vector.load %arg1[%c0, %c0_0] : memref<6x128xf32, #tpu.memory_space<vmem>>, vector<6x128xf32>
    %c0_1 = arith.constant 0 : index
    %c0_2 = arith.constant 0 : index
    %1 = vector.load %arg0[%c0_1, %c0_2] : memref<128x512xf32, #tpu.memory_space<vmem>>, vector<128x512xf32>
    %cst = arith.constant dense<0.000000e+00> : vector<6x512xf32>
    %2 = tpu.matmul %0, %1, %cst {dimension_numbers = #tpu.dot_dimension_numbers<[1], [0], [0], [1], [0, 0, 1, 1], [], []>} : vector<6x128xf32>, vector<128x512xf32>, vector<6x512xf32> -> vector<6x512xf32>
    %cst_3 = arith.constant dense<0.000000e+00> : vector<6xf32>
    %3 = vector.multi_reduction <add>, %2, %cst_3 [1] : vector<6x512xf32> to vector<6xf32>
    %4 = vector.shape_cast %3 : vector<6xf32> to vector<6x1xf32>
    %cst_4 = arith.constant 0.001953125 : f32
    %5 = vector.broadcast %cst_4 : f32 to vector<6x1xf32>
    %6 = arith.mulf %4, %5 : vector<6x1xf32>
    %7 = arith.mulf %2, %2 : vector<6x512xf32>
    %cst_5 = arith.constant dense<0.000000e+00> : vector<6xf32>
    %8 = vector.multi_reduction <add>, %7, %cst_5 [1] : vector<6x512xf32> to vector<6xf32>
    %9 = vector.shape_cast %8 : vector<6xf32> to vector<6x1xf32>
    %cst_6 = arith.constant 0.001953125 : f32
    %10 = vector.broadcast %cst_6 : f32 to vector<6x1xf32>
    %11 = arith.mulf %9, %10 : vector<6x1xf32>
    %12 = arith.mulf %6, %6 : vector<6x1xf32>
    %13 = arith.subf %11, %12 : vector<6x1xf32>
    %c0_7 = arith.constant 0 : index
    %c0_8 = arith.constant 0 : index
    %14 = vector.load %arg2[%c0_7, %c0_8] : memref<6x1xf32, #tpu.memory_space<vmem>>, vector<6x1xf32>
    %cst_9 = arith.constant 9.99999974E-6 : f32
    %15 = vector.broadcast %cst_9 : f32 to vector<6x1xf32>
    %16 = arith.addf %13, %15 : vector<6x1xf32>
    %17 = math.rsqrt %16 : vector<6x1xf32>
    %18 = arith.mulf %14, %17 : vector<6x1xf32>
    %c0_10 = arith.constant 0 : index
    %c0_11 = arith.constant 0 : index
    %19 = vector.load %arg3[%c0_10, %c0_11] : memref<6x1xf32, #tpu.memory_space<vmem>>, vector<6x1xf32>
    %20 = arith.mulf %6, %18 : vector<6x1xf32>
    %21 = arith.subf %19, %20 : vector<6x1xf32>
    %22 = vector.broadcast %18 : vector<6x1xf32> to vector<6x512xf32>
    %23 = arith.mulf %2, %22 : vector<6x512xf32>
    %24 = vector.broadcast %21 : vector<6x1xf32> to vector<6x512xf32>
    %25 = arith.addf %23, %24 : vector<6x512xf32>
    %26 = arith.negf %25 : vector<6x512xf32>
    %27 = math.exp %26 : vector<6x512xf32>
    %cst_12 = arith.constant 1.000000e+00 : f32
    %28 = vector.broadcast %cst_12 : f32 to vector<6x512xf32>
    %29 = arith.addf %28, %27 : vector<6x512xf32>
    %30 = arith.divf %28, %29 : vector<6x512xf32>
    %cst_13 = arith.constant 0.000000e+00 : f32
    %31 = vector.broadcast %cst_13 : f32 to vector<1x1xf32>
    %32 = vector.extract_strided_slice %30 {offsets = [0, 0], sizes = [1, 256], strides = [1, 1]} : vector<6x512xf32> to vector<1x256xf32>
    %33 = vector.extract_strided_slice %30 {offsets = [1, 0], sizes = [1, 256], strides = [1, 1]} : vector<6x512xf32> to vector<1x256xf32>
    %34 = vector.extract_strided_slice %30 {offsets = [2, 0], sizes = [1, 256], strides = [1, 1]} : vector<6x512xf32> to vector<1x256xf32>
    %35 = vector.extract_strided_slice %30 {offsets = [3, 0], sizes = [1, 256], strides = [1, 1]} : vector<6x512xf32> to vector<1x256xf32>
    %36 = vector.extract_strided_slice %30 {offsets = [4, 0], sizes = [1, 256], strides = [1, 1]} : vector<6x512xf32> to vector<1x256xf32>
    %37 = vector.extract_strided_slice %30 {offsets = [5, 0], sizes = [1, 256], strides = [1, 1]} : vector<6x512xf32> to vector<1x256xf32>
    %38 = tpu.concatenate %32, %33, %34, %35, %36, %37 in 1 : vector<1x256xf32>, vector<1x256xf32>, vector<1x256xf32>, vector<1x256xf32>, vector<1x256xf32>, vector<1x256xf32> -> vector<1x1536xf32>
    %c0_14 = arith.constant 0 : index
    %c0_15 = arith.constant 0 : index
    %39 = vector.load %arg4[%c0_14, %c0_15] : memref<10x1536xf32, #tpu.memory_space<vmem>>, vector<10x1536xf32>
    %cst_16 = arith.constant dense<0.000000e+00> : vector<1x10xf32>
    %40 = tpu.matmul %38, %39, %cst_16 {dimension_numbers = #tpu.dot_dimension_numbers<[1], [1], [0], [0], [0, 0, 1, 0], [], []>} : vector<1x1536xf32>, vector<10x1536xf32>, vector<1x10xf32> -> vector<1x10xf32>
    %c0_17 = arith.constant 0 : index
    %c0_18 = arith.constant 0 : index
    %41 = vector.load %arg5[%c0_17, %c0_18] : memref<1x10xf32, #tpu.memory_space<vmem>>, vector<1x10xf32>
    %42 = arith.addf %40, %41 : vector<1x10xf32>
    %cst_19 = arith.constant dense<0xFF800000> : vector<1xf32>
    %43 = vector.multi_reduction <maximumf>, %42, %cst_19 [1] : vector<1x10xf32> to vector<1xf32>
    %44 = vector.shape_cast %43 : vector<1xf32> to vector<1x1xf32>
    %45 = vector.broadcast %44 : vector<1x1xf32> to vector<1x10xf32>
    %46 = arith.subf %42, %45 : vector<1x10xf32>
    %47 = math.exp %46 : vector<1x10xf32>
    %cst_20 = arith.constant dense<0.000000e+00> : vector<1xf32>
    %48 = vector.multi_reduction <add>, %47, %cst_20 [1] : vector<1x10xf32> to vector<1xf32>
    %49 = vector.shape_cast %48 : vector<1xf32> to vector<1x1xf32>
    %50 = math.log %49 : vector<1x1xf32>
    %51 = arith.addf %50, %44 : vector<1x1xf32>
    %52 = vector.broadcast %51 : vector<1x1xf32> to vector<1x10xf32>
    %53 = arith.subf %42, %52 : vector<1x10xf32>
    %c0_21 = arith.constant 0 : index
    %c0_22 = arith.constant 0 : index
    %54 = vector.load %arg6[%c0_21, %c0_22] : memref<2x10xf32, #tpu.memory_space<vmem>>, vector<1x10xf32>
    %55 = arith.mulf %54, %53 : vector<1x10xf32>
    %cst_23 = arith.constant dense<0.000000e+00> : vector<1xf32>
    %56 = vector.multi_reduction <add>, %55, %cst_23 [1] : vector<1x10xf32> to vector<1xf32>
    %57 = vector.shape_cast %56 : vector<1xf32> to vector<1x1xf32>
    %58 = arith.subf %31, %57 : vector<1x1xf32>
    %59 = vector.extract_strided_slice %30 {offsets = [0, 256], sizes = [1, 256], strides = [1, 1]} : vector<6x512xf32> to vector<1x256xf32>
    %60 = vector.extract_strided_slice %30 {offsets = [1, 256], sizes = [1, 256], strides = [1, 1]} : vector<6x512xf32> to vector<1x256xf32>
    %61 = vector.extract_strided_slice %30 {offsets = [2, 256], sizes = [1, 256], strides = [1, 1]} : vector<6x512xf32> to vector<1x256xf32>
    %62 = vector.extract_strided_slice %30 {offsets = [3, 256], sizes = [1, 256], strides = [1, 1]} : vector<6x512xf32> to vector<1x256xf32>
    %63 = vector.extract_strided_slice %30 {offsets = [4, 256], sizes = [1, 256], strides = [1, 1]} : vector<6x512xf32> to vector<1x256xf32>
    %64 = vector.extract_strided_slice %30 {offsets = [5, 256], sizes = [1, 256], strides = [1, 1]} : vector<6x512xf32> to vector<1x256xf32>
    %65 = tpu.concatenate %59, %60, %61, %62, %63, %64 in 1 : vector<1x256xf32>, vector<1x256xf32>, vector<1x256xf32>, vector<1x256xf32>, vector<1x256xf32>, vector<1x256xf32> -> vector<1x1536xf32>
    %c0_24 = arith.constant 0 : index
    %c0_25 = arith.constant 0 : index
    %66 = vector.load %arg4[%c0_24, %c0_25] : memref<10x1536xf32, #tpu.memory_space<vmem>>, vector<10x1536xf32>
    %cst_26 = arith.constant dense<0.000000e+00> : vector<1x10xf32>
    %67 = tpu.matmul %65, %66, %cst_26 {dimension_numbers = #tpu.dot_dimension_numbers<[1], [1], [0], [0], [0, 0, 1, 0], [], []>} : vector<1x1536xf32>, vector<10x1536xf32>, vector<1x10xf32> -> vector<1x10xf32>
    %c0_27 = arith.constant 0 : index
    %c0_28 = arith.constant 0 : index
    %68 = vector.load %arg5[%c0_27, %c0_28] : memref<1x10xf32, #tpu.memory_space<vmem>>, vector<1x10xf32>
    %69 = arith.addf %67, %68 : vector<1x10xf32>
    %cst_29 = arith.constant dense<0xFF800000> : vector<1xf32>
    %70 = vector.multi_reduction <maximumf>, %69, %cst_29 [1] : vector<1x10xf32> to vector<1xf32>
    %71 = vector.shape_cast %70 : vector<1xf32> to vector<1x1xf32>
    %72 = vector.broadcast %71 : vector<1x1xf32> to vector<1x10xf32>
    %73 = arith.subf %69, %72 : vector<1x10xf32>
    %74 = math.exp %73 : vector<1x10xf32>
    %cst_30 = arith.constant dense<0.000000e+00> : vector<1xf32>
    %75 = vector.multi_reduction <add>, %74, %cst_30 [1] : vector<1x10xf32> to vector<1xf32>
    %76 = vector.shape_cast %75 : vector<1xf32> to vector<1x1xf32>
    %77 = math.log %76 : vector<1x1xf32>
    %78 = arith.addf %77, %71 : vector<1x1xf32>
    %79 = vector.broadcast %78 : vector<1x1xf32> to vector<1x10xf32>
    %80 = arith.subf %69, %79 : vector<1x10xf32>
    %c1 = arith.constant 1 : index
    %c0_31 = arith.constant 0 : index
    %81 = vector.load %arg6[%c1, %c0_31] : memref<2x10xf32, #tpu.memory_space<vmem>>, vector<1x10xf32>
    %82 = arith.mulf %81, %80 : vector<1x10xf32>
    %cst_32 = arith.constant dense<0.000000e+00> : vector<1xf32>
    %83 = vector.multi_reduction <add>, %82, %cst_32 [1] : vector<1x10xf32> to vector<1xf32>
    %84 = vector.shape_cast %83 : vector<1xf32> to vector<1x1xf32>
    %85 = arith.subf %58, %84 : vector<1x1xf32>
    %cst_33 = arith.constant 5.000000e-01 : f32
    %86 = vector.broadcast %cst_33 : f32 to vector<1x1xf32>
    %87 = arith.mulf %85, %86 : vector<1x1xf32>
    %c0_34 = arith.constant 0 : index
    %c0_35 = arith.constant 0 : index
    %88 = vector.load %arg7[%c0_34, %c0_35] : memref<1x1xf32, #tpu.memory_space<vmem>>, vector<1x1xf32>
    tpu.vector_store %arg7[%c0_34, %c0_35], %87 {strides = array<i32>} : memref<1x1xf32, #tpu.memory_space<vmem>>, vector<1x1xf32>,
    return
  }
}

</mosaic_0001>

<llo_original>
// kernel: torch_test_forward.1
$region0: #{torch_test_forward.1}
  #allocation0 [shape = 'u32[]', space=smem, size = 0x4, offset = 0x4, fixed_abs, tag = 'smem constant byte address 0x4 - core index']
  #allocation1 [shape = 'u32[144,128]{1,0:T(1,128)}', space=vmem, size = 0x12000, scoped, tag = 'internal scratch']
  %s0 = inlined_call_operand.vmem [shape: f32[128,512], index: 0, kind: input, shape index: {}]
  %s1 = inlined_call_operand.vmem [shape: f32[6,128], index: 1, kind: input, shape index: {}]
  %s2 = inlined_call_operand.vmem [shape: f32[6,1], index: 2, kind: input, shape index: {}]
  %s3 = inlined_call_operand.vmem [shape: f32[6,1], index: 3, kind: input, shape index: {}]
  %s4 = inlined_call_operand.vmem [shape: f32[10,1536], index: 4, kind: input, shape index: {}]
  %s5 = inlined_call_operand.vmem [shape: f32[1,10], index: 5, kind: input, shape index: {}]
  %s6 = inlined_call_operand.vmem [shape: f32[2,10], index: 6, kind: input, shape index: {}]
  %s7 = inlined_call_operand.hbm [shape: f32[1,1], index: 7, kind: output, shape index: {}]
  %s8 = sld [smem:[#allocation0]]
  $region38: #{torch_test_forward.1} parent=0
    _
  %s10 = ssub.s32 1, %s8
  %s11 = scalar_select 0, %s10, %s8
  $region1: #{torch_test_forward.1} parent=0
    #allocation2 [shape = 'u8[512]{0}', space=vmem, size = 0x400, scoped, tag = 'output window, operand 0, single buffered']
    #allocation3 [shape = 's32[1]{0}', space=sflag, size = 0x4, scoped, tag = 'scoped memory for torch_test_forward.1']
    %12 = vsyncpa [#allocation3], 0
    // Predicated region
    $region2: #{torch_test_forward.1} parent=1 // pred_check
      _
    $region3: #{torch_test_forward.1} parent=1 // pred_check_branch
      %14 = sbr.rel (0) target = $region5
    $region4: #{torch_test_forward.1} parent=1 // pred_region
      _
    $region5: #{torch_test_forward.1} parent=1 // pred_fallthru
      _
    // Predicated region
    $region6: #{torch_test_forward.1} parent=1 // pred_check
      _
    $region7: #{torch_test_forward.1} parent=1 // pred_check_branch
      %16 = sbr.rel (0) target = $region9
    $region8: #{torch_test_forward.1} parent=1 // pred_region
      _
    $region9: #{torch_test_forward.1} parent=1 // pred_fallthru
      _
    // Predicated region
    $region10: #{torch_test_forward.1} parent=1 // pred_check
      _
    $region11: #{torch_test_forward.1} parent=1 // pred_check_branch
      %18 = sbr.rel (0) target = $region13
    $region12: #{torch_test_forward.1} parent=1 // pred_region
      _
    $region13: #{torch_test_forward.1} parent=1 // pred_fallthru
      _
    // Predicated region
    $region14: #{torch_test_forward.1} parent=1 // pred_check
      _
    $region15: #{torch_test_forward.1} parent=1 // pred_check_branch
      %20 = sbr.rel (0) target = $region17
    $region16: #{torch_test_forward.1} parent=1 // pred_region
      _
    $region17: #{torch_test_forward.1} parent=1 // pred_fallthru
      _
    // Predicated region
    $region18: #{torch_test_forward.1} parent=1 // pred_check
      _
    $region19: #{torch_test_forward.1} parent=1 // pred_check_branch
      %22 = sbr.rel (0) target = $region21
    $region20: #{torch_test_forward.1} parent=1 // pred_region
      _
    $region21: #{torch_test_forward.1} parent=1 // pred_fallthru
      _
    // Predicated region
    $region22: #{torch_test_forward.1} parent=1 // pred_check
      _
    $region23: #{torch_test_forward.1} parent=1 // pred_check_branch
      %24 = sbr.rel (0) target = $region25
    $region24: #{torch_test_forward.1} parent=1 // pred_region
      _
    $region25: #{torch_test_forward.1} parent=1 // pred_fallthru
      _
    // Predicated region
    $region26: #{torch_test_forward.1} parent=1 // pred_check
      _
    $region27: #{torch_test_forward.1} parent=1 // pred_check_branch
      %26 = sbr.rel (0) target = $region29
    $region28: #{torch_test_forward.1} parent=1 // pred_region
      _
    $region29: #{torch_test_forward.1} parent=1 // pred_fallthru
      _
    %v27 = vld [vmem:[%s1] sm:$0x3f]
    %v28 = vld [vmem:[%s0] sm:$0xff]
    %v29 = vld [vmem:[%s0 + $0x8] sm:$0xff]
    %v30 = vld [vmem:[%s0 + $0x10] sm:$0xff]
    %v31 = vld [vmem:[%s0 + $0x18] sm:$0xff]
    %v32 = vld [vmem:[%s0 + $0x20] sm:$0xff]
    %v33 = vld [vmem:[%s0 + $0x28] sm:$0xff]
    %v34 = vld [vmem:[%s0 + $0x30] sm:$0xff]
    %v35 = vld [vmem:[%s0 + $0x38] sm:$0xff]
    %v36 = vld [vmem:[%s0 + $0x40] sm:$0xff]
    %v37 = vld [vmem:[%s0 + $0x48] sm:$0xff]
    %v38 = vld [vmem:[%s0 + $0x50] sm:$0xff]
    %v39 = vld [vmem:[%s0 + $0x58] sm:$0xff]
    %v40 = vld [vmem:[%s0 + $0x60] sm:$0xff]
    %v41 = vld [vmem:[%s0 + $0x68] sm:$0xff]
    %v42 = vld [vmem:[%s0 + $0x70] sm:$0xff]
    %v43 = vld [vmem:[%s0 + $0x78] sm:$0xff]
    %v44 = vld [vmem:[%s0 + $0x80] sm:$0xff]
    %v45 = vld [vmem:[%s0 + $0x88] sm:$0xff]
    %v46 = vld [vmem:[%s0 + $0x90] sm:$0xff]
    %v47 = vld [vmem:[%s0 + $0x98] sm:$0xff]
    %v48 = vld [vmem:[%s0 + $0xa0] sm:$0xff]
    %v49 = vld [vmem:[%s0 + $0xa8] sm:$0xff]
    %v50 = vld [vmem:[%s0 + $0xb0] sm:$0xff]
    %v51 = vld [vmem:[%s0 + $0xb8] sm:$0xff]
    %v52 = vld [vmem:[%s0 + $0xc0] sm:$0xff]
    %v53 = vld [vmem:[%s0 + $0xc8] sm:$0xff]
    %v54 = vld [vmem:[%s0 + $0xd0] sm:$0xff]
    %v55 = vld [vmem:[%s0 + $0xd8] sm:$0xff]
    %v56 = vld [vmem:[%s0 + $0xe0] sm:$0xff]
    %v57 = vld [vmem:[%s0 + $0xe8] sm:$0xff]
    %v58 = vld [vmem:[%s0 + $0xf0] sm:$0xff]
    %v59 = vld [vmem:[%s0 + $0xf8] sm:$0xff]
    %v60 = vld [vmem:[%s0 + $0x100] sm:$0xff]
    %v61 = vld [vmem:[%s0 + $0x108] sm:$0xff]
    %v62 = vld [vmem:[%s0 + $0x110] sm:$0xff]
    %v63 = vld [vmem:[%s0 + $0x118] sm:$0xff]
    %v64 = vld [vmem:[%s0 + $0x120] sm:$0xff]
    %v65 = vld [vmem:[%s0 + $0x128] sm:$0xff]
    %v66 = vld [vmem:[%s0 + $0x130] sm:$0xff]
    %v67 = vld [vmem:[%s0 + $0x138] sm:$0xff]
    %v68 = vld [vmem:[%s0 + $0x140] sm:$0xff]
    %v69 = vld [vmem:[%s0 + $0x148] sm:$0xff]
    %v70 = vld [vmem:[%s0 + $0x150] sm:$0xff]
    %v71 = vld [vmem:[%s0 + $0x158] sm:$0xff]
    %v72 = vld [vmem:[%s0 + $0x160] sm:$0xff]
    %v73 = vld [vmem:[%s0 + $0x168] sm:$0xff]
    %v74 = vld [vmem:[%s0 + $0x170] sm:$0xff]
    %v75 = vld [vmem:[%s0 + $0x178] sm:$0xff]
    %v76 = vld [vmem:[%s0 + $0x180] sm:$0xff]
    %v77 = vld [vmem:[%s0 + $0x188] sm:$0xff]
    %v78 = vld [vmem:[%s0 + $0x190] sm:$0xff]
    %v79 = vld [vmem:[%s0 + $0x198] sm:$0xff]
    %v80 = vld [vmem:[%s0 + $0x1a0] sm:$0xff]
    %v81 = vld [vmem:[%s0 + $0x1a8] sm:$0xff]
    %v82 = vld [vmem:[%s0 + $0x1b0] sm:$0xff]
    %v83 = vld [vmem:[%s0 + $0x1b8] sm:$0xff]
    %v84 = vld [vmem:[%s0 + $0x1c0] sm:$0xff]
    %v85 = vld [vmem:[%s0 + $0x1c8] sm:$0xff]
    %v86 = vld [vmem:[%s0 + $0x1d0] sm:$0xff]
    %v87 = vld [vmem:[%s0 + $0x1d8] sm:$0xff]
    %v88 = vld [vmem:[%s0 + $0x1e0] sm:$0xff]
    %v89 = vld [vmem:[%s0 + $0x1e8] sm:$0xff]
    %v90 = vld [vmem:[%s0 + $0x1f0] sm:$0xff]
    %v91 = vld [vmem:[%s0 + $0x1f8] sm:$0xff]
    %92 = vmatprep.subr.mxu0 %v89
    %93 = vmatpush1.msra.mxu0 %v88
    %94 = vmatprep.subr.mxu0 %v85
    %95 = vmatpush1.msra.mxu0 %v84
    %96 = vmatprep.subr.mxu0 %v81
    %97 = vmatpush1.msra.mxu0 %v80
    %98 = vmatprep.subr.mxu0 %v77
    %99 = vmatpush1.msra.mxu0 %v76
    %100 = vmatprep.subr.mxu0 %v73
    %101 = vmatpush1.msra.mxu0 %v72
    %102 = vmatprep.subr.mxu0 %v69
    %103 = vmatpush1.msra.mxu0 %v68
    %104 = vmatprep.subr.mxu0 %v65
    %105 = vmatpush1.msra.mxu0 %v64
    %106 = vmatprep.subr.mxu0 %v61
    %107 = vmatpush1.msra.mxu0 %v60
    %108 = vmatprep.subr.mxu0 %v57
    %109 = vmatpush1.msra.mxu0 %v56
    %110 = vmatprep.subr.mxu0 %v53
    %111 = vmatpush1.msra.mxu0 %v52
    %112 = vmatprep.subr.mxu0 %v49
    %113 = vmatpush1.msra.mxu0 %v48
    %114 = vmatprep.subr.mxu0 %v45
    %115 = vmatpush1.msra.mxu0 %v44
    %116 = vmatprep.subr.mxu0 %v41
    %117 = vmatpush1.msra.mxu0 %v40
    %118 = vmatprep.subr.mxu0 %v37
    %119 = vmatpush1.msra.mxu0 %v36
    %120 = vmatprep.subr.mxu0 %v33
    %121 = vmatpush1.msra.mxu0 %v32
    %122 = vmatprep.subr.mxu0 %v29
    %123 = vmatpush1.msra.mxu0 %v28
    %124 = vmatprep.subr.mxu0 0.0
    %125 = vmatpush2.msra.mxu0 0.0
    %126 = vmatprep.subr.mxu0 0.0
    %127 = vmatpush2.msra.mxu0 0.0
    %128 = vmatprep.subr.mxu0 0.0
    %129 = vmatpush2.msra.mxu0 0.0
    %130 = vmatprep.subr.mxu0 0.0
    %131 = vmatpush2.msra.mxu0 0.0
    %132 = vmatprep.subr.mxu0 0.0
    %133 = vmatpush2.msra.mxu0 0.0
    %134 = vmatprep.subr.mxu0 0.0
    %135 = vmatpush2.msra.mxu0 0.0
    %136 = vmatprep.subr.mxu0 0.0
    %137 = vmatpush2.msra.mxu0 0.0
    %138 = vmatprep.subr.mxu0 0.0
    %139 = vmatpush2.msra.mxu0 0.0
    %140 = vmatprep.subr.mxu0 0.0
    %141 = vmatpush2.msra.mxu0 0.0
    %142 = vmatprep.subr.mxu0 0.0
    %143 = vmatpush2.msra.mxu0 0.0
    %144 = vmatprep.subr.mxu0 0.0
    %145 = vmatpush2.msra.mxu0 0.0
    %146 = vmatprep.subr.mxu0 0.0
    %147 = vmatpush2.msra.mxu0 0.0
    %148 = vmatprep.subr.mxu0 0.0
    %149 = vmatpush2.msra.mxu0 0.0
    %150 = vmatprep.subr.mxu0 0.0
    %151 = vmatpush2.msra.mxu0 0.0
    %152 = vmatprep.subr.mxu0 0.0
    %153 = vmatpush2.msra.mxu0 0.0
    %154 = vmatprep.subr.mxu0 0.0
    %155 = vmatpush2.msra.mxu0 0.0
    %156 = vmatprep.mubr.f32.mxu0 0.0
    %157 = vmatmul.mubr.f32.gmra.mxu0 %v27
    %v158 = vpop.f32.mrf.mxu0
    %v159 = vadd.f32 0.0, %v158
    %v160 = vpop.f32.mrf.mxu0
    %v161 = vadd.f32 0.0, %v160
    %162 = vdwg.mxu0
    %163 = vmatprep.subr.mxu0 %v91
    %164 = vmatpush1.msra.mxu0 %v90
    %165 = vmatprep.subr.mxu0 %v87
    %166 = vmatpush1.msra.mxu0 %v86
    %167 = vmatprep.subr.mxu0 %v83
    %168 = vmatpush1.msra.mxu0 %v82
    %169 = vmatprep.subr.mxu0 %v79
    %170 = vmatpush1.msra.mxu0 %v78
    %171 = vmatprep.subr.mxu0 %v75
    %172 = vmatpush1.msra.mxu0 %v74
    %173 = vmatprep.subr.mxu0 %v71
    %174 = vmatpush1.msra.mxu0 %v70
    %175 = vmatprep.subr.mxu0 %v67
    %176 = vmatpush1.msra.mxu0 %v66
    %177 = vmatprep.subr.mxu0 %v63
    %178 = vmatpush1.msra.mxu0 %v62
    %179 = vmatprep.subr.mxu0 %v59
    %180 = vmatpush1.msra.mxu0 %v58
    %181 = vmatprep.subr.mxu0 %v55
    %182 = vmatpush1.msra.mxu0 %v54
    %183 = vmatprep.subr.mxu0 %v51
    %184 = vmatpush1.msra.mxu0 %v50
    %185 = vmatprep.subr.mxu0 %v47
    %186 = vmatpush1.msra.mxu0 %v46
    %187 = vmatprep.subr.mxu0 %v43
    %188 = vmatpush1.msra.mxu0 %v42
    %189 = vmatprep.subr.mxu0 %v39
    %190 = vmatpush1.msra.mxu0 %v38
    %191 = vmatprep.subr.mxu0 %v35
    %192 = vmatpush1.msra.mxu0 %v34
    %193 = vmatprep.subr.mxu0 %v31
    %194 = vmatpush1.msra.mxu0 %v30
    %195 = vmatprep.subr.mxu0 0.0
    %196 = vmatpush2.msra.mxu0 0.0
    %197 = vmatprep.subr.mxu0 0.0
    %198 = vmatpush2.msra.mxu0 0.0
    %199 = vmatprep.subr.mxu0 0.0
    %200 = vmatpush2.msra.mxu0 0.0
    %201 = vmatprep.subr.mxu0 0.0
    %202 = vmatpush2.msra.mxu0 0.0
    %203 = vmatprep.subr.mxu0 0.0
    %204 = vmatpush2.msra.mxu0 0.0
    %205 = vmatprep.subr.mxu0 0.0
    %206 = vmatpush2.msra.mxu0 0.0
    %207 = vmatprep.subr.mxu0 0.0
    %208 = vmatpush2.msra.mxu0 0.0
    %209 = vmatprep.subr.mxu0 0.0
    %210 = vmatpush2.msra.mxu0 0.0
    %211 = vmatprep.subr.mxu0 0.0
    %212 = vmatpush2.msra.mxu0 0.0
    %213 = vmatprep.subr.mxu0 0.0
    %214 = vmatpush2.msra.mxu0 0.0
    %215 = vmatprep.subr.mxu0 0.0
    %216 = vmatpush2.msra.mxu0 0.0
    %217 = vmatprep.subr.mxu0 0.0
    %218 = vmatpush2.msra.mxu0 0.0
    %219 = vmatprep.subr.mxu0 0.0
    %220 = vmatpush2.msra.mxu0 0.0
    %221 = vmatprep.subr.mxu0 0.0
    %222 = vmatpush2.msra.mxu0 0.0
    %223 = vmatprep.subr.mxu0 0.0
    %224 = vmatpush2.msra.mxu0 0.0
    %225 = vmatprep.subr.mxu0 0.0
    %226 = vmatpush2.msra.mxu0 0.0
    %227 = vmatprep.mubr.f32.mxu0 0.0
    %228 = vmatmul.mubr.f32.gmra.mxu0 %v27
    %v229 = vpop.f32.mrf.mxu0
    %v230 = vadd.f32 0.0, %v229
    %v231 = vpop.f32.mrf.mxu0
    %v232 = vadd.f32 0.0, %v231
    %233 = vdwg.mxu0
    %vm234 = vcmask 1045504
    %v235 = vsel %vm234, %v159, 0.0
    %v236 = vsel %vm234, %v161, 0.0
    %v237 = vadd.f32 %v235, %v236
    %v238 = vsel %vm234, %v230, 0.0
    %v239 = vadd.f32 %v237, %v238
    %v240 = vsel %vm234, %v232, 0.0
    %v241 = vadd.f32 %v239, %v240
    %242 = vadd.xlane.f32.xlu0 %v241
    %v243 = vpop.xlane.xlu0 %242
    %v244 = vmul.f32 %v243, 0.001953125
    %v245 = vmul.f32 %v159, %v159
    %v246 = vmul.f32 %v161, %v161
    %v247 = vmul.f32 %v230, %v230
    %v248 = vmul.f32 %v232, %v232
    %v249 = vsel %vm234, %v245, 0.0
    %v250 = vsel %vm234, %v246, 0.0
    %v251 = vadd.f32 %v249, %v250
    %v252 = vsel %vm234, %v247, 0.0
    %v253 = vadd.f32 %v251, %v252
    %v254 = vsel %vm234, %v248, 0.0
    %v255 = vadd.f32 %v253, %v254
    %256 = vadd.xlane.f32.xlu0 %v255
    %v257 = vpop.xlane.xlu0 %256
    %v258 = vmul.f32 %v257, 0.001953125
    %v259 = vmul.f32 %v244, %v244
    %v260 = vsub.f32 %v258, %v259
    %v261 = vld [vmem:[%s2] sm:$0x3f]
    %v262 = vadd.f32 %v260, 1e-05
    %v263 = vrsqrt.pop %v262
    %v264 = vmul.f32 %v261, %v263
    %v265 = vld [vmem:[%s3] sm:$0x3f]
    %v266 = vmul.f32 %v244, %v264
    %v267 = vsub.f32 %v265, %v266
    %269 = vset.pattern.permute.xlu0 0
    %270 = vperm.xlu0 %269, %v264
    %v271 = vpop.permute.xlu0 %270
    %v273 = vmul.f32 %v159, %v271
    %v274 = vmul.f32 %v161, %v271
    %v275 = vmul.f32 %v230, %v271
    %v276 = vmul.f32 %v232, %v271
    %278 = vset.pattern.permute.xlu0 0
    %279 = vperm.xlu0 %278, %v267
    %v280 = vpop.permute.xlu0 %279
    %v282 = vadd.f32 %v273, %v280
    %v283 = vadd.f32 %v274, %v280
    %v284 = vadd.f32 %v275, %v280
    %v285 = vadd.f32 %v276, %v280
    %v286 = vxor.u32 %v282, 2147483648
    %v287 = vxor.u32 %v283, 2147483648
    %v288 = vxor.u32 %v284, 2147483648
    %v289 = vxor.u32 %v285, 2147483648
    %v290 = vmul.f32 %v286, 1.442695
    %v291 = vpow.pop %v290
    %v292 = vmul.f32 %v287, 1.442695
    %v293 = vpow.pop %v292
    %v294 = vmul.f32 %v288, 1.442695
    %v295 = vpow.pop %v294
    %v296 = vmul.f32 %v289, 1.442695
    %v297 = vpow.pop %v296
    %v298 = vadd.f32 %v291, 1.0
    %v299 = vadd.f32 %v293, 1.0
    %v300 = vadd.f32 %v295, 1.0
    %v301 = vadd.f32 %v297, 1.0
    %v302 = vrcp.pop %v298
    %v303 = vmul.f32 1.0, %v302
    %v304 = vrcp.pop %v299
    %v305 = vmul.f32 1.0, %v304
    %v306 = vrcp.pop %v300
    %v307 = vmul.f32 1.0, %v306
    %v308 = vrcp.pop %v301
    %v309 = vmul.f32 1.0, %v308
    %v312 = vrot.slane %v303, 1
    %v313 = vrot.slane %v305, 1
    %v316 = vrot.slane %v303, 2
    %v317 = vrot.slane %v305, 2
    %v320 = vrot.slane %v303, 3
    %v321 = vrot.slane %v305, 3
    %v324 = vrot.slane %v303, 4
    %v325 = vrot.slane %v305, 4
    %v328 = vrot.slane %v303, 5
    %v329 = vrot.slane %v305, 5
    %v332 = vld [vmem:[%s4] sm:$0xff]
    %v333 = vld [vmem:[%s4 + $0x8] sm:$0xff]
    %v334 = vld [vmem:[%s4 + $0x10] sm:$0xff]
    %v335 = vld [vmem:[%s4 + $0x18] sm:$0xff]
    %v336 = vld [vmem:[%s4 + $0x20] sm:$0xff]
    %v337 = vld [vmem:[%s4 + $0x28] sm:$0xff]
    %v338 = vld [vmem:[%s4 + $0x30] sm:$0xff]
    %v339 = vld [vmem:[%s4 + $0x38] sm:$0xff]
    %v340 = vld [vmem:[%s4 + $0x40] sm:$0xff]
    %v341 = vld [vmem:[%s4 + $0x48] sm:$0xff]
    %v342 = vld [vmem:[%s4 + $0x50] sm:$0xff]
    %v343 = vld [vmem:[%s4 + $0x58] sm:$0xff]
    %v344 = vld [vmem:[%s4 + $0x60] sm:$0x3]
    %v345 = vld [vmem:[%s4 + $0x68] sm:$0x3]
    %v346 = vld [vmem:[%s4 + $0x70] sm:$0x3]
    %v347 = vld [vmem:[%s4 + $0x78] sm:$0x3]
    %v348 = vld [vmem:[%s4 + $0x80] sm:$0x3]
    %v349 = vld [vmem:[%s4 + $0x88] sm:$0x3]
    %v350 = vld [vmem:[%s4 + $0x90] sm:$0x3]
    %v351 = vld [vmem:[%s4 + $0x98] sm:$0x3]
    %v352 = vld [vmem:[%s4 + $0xa0] sm:$0x3]
    %v353 = vld [vmem:[%s4 + $0xa8] sm:$0x3]
    %v354 = vld [vmem:[%s4 + $0xb0] sm:$0x3]
    %v355 = vld [vmem:[%s4 + $0xb8] sm:$0x3]
    %v356 = vld [vmem:[%s5] sm:$0x1]
    %357 = vmatprep.subr.mxu0 0.0
    %358 = vmatpush1.xpose.msra.mxu0 0.0
    %359 = vmatprep.subr.mxu0 0.0
    %360 = vmatpush1.xpose.msra.mxu0 0.0
    %361 = vmatprep.subr.mxu0 0.0
    %362 = vmatpush1.xpose.msra.mxu0 0.0
    %363 = vmatprep.subr.mxu0 0.0
    %364 = vmatpush1.xpose.msra.mxu0 0.0
    %365 = vmatprep.subr.mxu0 0.0
    %366 = vmatpush1.xpose.msra.mxu0 0.0
    %367 = vmatprep.subr.mxu0 0.0
    %368 = vmatpush1.xpose.msra.mxu0 0.0
    %369 = vmatprep.subr.mxu0 0.0
    %370 = vmatpush1.xpose.msra.mxu0 0.0
    %371 = vmatprep.subr.mxu0 0.0
    %372 = vmatpush1.xpose.msra.mxu0 0.0
    %373 = vmatprep.subr.mxu0 0.0
    %374 = vmatpush1.xpose.msra.mxu0 0.0
    %375 = vmatprep.subr.mxu0 0.0
    %376 = vmatpush1.xpose.msra.mxu0 0.0
    %377 = vmatprep.subr.mxu0 0.0
    %378 = vmatpush1.xpose.msra.mxu0 0.0
    %379 = vmatprep.subr.mxu0 0.0
    %380 = vmatpush1.xpose.msra.mxu0 0.0
    %381 = vmatprep.subr.mxu0 0.0
    %382 = vmatpush1.xpose.msra.mxu0 0.0
    %383 = vmatprep.subr.mxu0 0.0
    %384 = vmatpush1.xpose.msra.mxu0 0.0
    %385 = vmatprep.subr.mxu0 %v345
    %386 = vmatpush1.xpose.msra.mxu0 %v344
    %387 = vmatprep.subr.mxu0 %v333
    %388 = vmatpush1.xpose.msra.mxu0 %v332
    %389 = vmatprep.subr.mxu0 0.0
    %390 = vmatpush2.xpose.msra.mxu0 0.0
    %391 = vmatprep.subr.mxu0 0.0
    %392 = vmatpush2.xpose.msra.mxu0 0.0
    %393 = vmatprep.subr.mxu0 0.0
    %394 = vmatpush2.xpose.msra.mxu0 0.0
    %395 = vmatprep.subr.mxu0 0.0
    %396 = vmatpush2.xpose.msra.mxu0 0.0
    %397 = vmatprep.subr.mxu0 0.0
    %398 = vmatpush2.xpose.msra.mxu0 0.0
    %399 = vmatprep.subr.mxu0 0.0
    %400 = vmatpush2.xpose.msra.mxu0 0.0
    %401 = vmatprep.subr.mxu0 0.0
    %402 = vmatpush2.xpose.msra.mxu0 0.0
    %403 = vmatprep.subr.mxu0 0.0
    %404 = vmatpush2.xpose.msra.mxu0 0.0
    %405 = vmatprep.subr.mxu0 0.0
    %406 = vmatpush2.xpose.msra.mxu0 0.0
    %407 = vmatprep.subr.mxu0 0.0
    %408 = vmatpush2.xpose.msra.mxu0 0.0
    %409 = vmatprep.subr.mxu0 0.0
    %410 = vmatpush2.xpose.msra.mxu0 0.0
    %411 = vmatprep.subr.mxu0 0.0
    %412 = vmatpush2.xpose.msra.mxu0 0.0
    %413 = vmatprep.subr.mxu0 0.0
    %414 = vmatpush2.xpose.msra.mxu0 0.0
    %415 = vmatprep.subr.mxu0 0.0
    %416 = vmatpush2.xpose.msra.mxu0 0.0
    %417 = vmatprep.subr.mxu0 0.0
    %418 = vmatpush2.xpose.msra.mxu0 0.0
    %419 = vmatprep.subr.mxu0 0.0
    %420 = vmatpush2.xpose.msra.mxu0 0.0
    %421 = vmatprep.mubr.f32.mxu0 %v305
    %422 = vmatmul.mubr.f32.gmra.mxu0 %v303
    %v423 = vpop.f32.mrf.mxu0
    %v424 = vadd.f32 %v356, %v423
    %v425 = vpop.f32.mrf.mxu0
    %426 = vdwg.mxu0
    %427 = vmatprep.subr.mxu0 0.0
    %428 = vmatpush1.xpose.msra.mxu0 0.0
    %429 = vmatprep.subr.mxu0 0.0
    %430 = vmatpush1.xpose.msra.mxu0 0.0
    %431 = vmatprep.subr.mxu0 0.0
    %432 = vmatpush1.xpose.msra.mxu0 0.0
    %433 = vmatprep.subr.mxu0 0.0
    %434 = vmatpush1.xpose.msra.mxu0 0.0
    %435 = vmatprep.subr.mxu0 0.0
    %436 = vmatpush1.xpose.msra.mxu0 0.0
    %437 = vmatprep.subr.mxu0 0.0
    %438 = vmatpush1.xpose.msra.mxu0 0.0
    %439 = vmatprep.subr.mxu0 0.0
    %440 = vmatpush1.xpose.msra.mxu0 0.0
    %441 = vmatprep.subr.mxu0 0.0
    %442 = vmatpush1.xpose.msra.mxu0 0.0
    %443 = vmatprep.subr.mxu0 0.0
    %444 = vmatpush1.xpose.msra.mxu0 0.0
    %445 = vmatprep.subr.mxu0 0.0
    %446 = vmatpush1.xpose.msra.mxu0 0.0
    %447 = vmatprep.subr.mxu0 0.0
    %448 = vmatpush1.xpose.msra.mxu0 0.0
    %449 = vmatprep.subr.mxu0 0.0
    %450 = vmatpush1.xpose.msra.mxu0 0.0
    %451 = vmatprep.subr.mxu0 0.0
    %452 = vmatpush1.xpose.msra.mxu0 0.0
    %453 = vmatprep.subr.mxu0 0.0
    %454 = vmatpush1.xpose.msra.mxu0 0.0
    %455 = vmatprep.subr.mxu0 %v347
    %456 = vmatpush1.xpose.msra.mxu0 %v346
    %457 = vmatprep.subr.mxu0 %v335
    %458 = vmatpush1.xpose.msra.mxu0 %v334
    %459 = vmatprep.subr.mxu0 0.0
    %460 = vmatpush2.xpose.msra.mxu0 0.0
    %461 = vmatprep.subr.mxu0 0.0
    %462 = vmatpush2.xpose.msra.mxu0 0.0
    %463 = vmatprep.subr.mxu0 0.0
    %464 = vmatpush2.xpose.msra.mxu0 0.0
    %465 = vmatprep.subr.mxu0 0.0
    %466 = vmatpush2.xpose.msra.mxu0 0.0
    %467 = vmatprep.subr.mxu0 0.0
    %468 = vmatpush2.xpose.msra.mxu0 0.0
    %469 = vmatprep.subr.mxu0 0.0
    %470 = vmatpush2.xpose.msra.mxu0 0.0
    %471 = vmatprep.subr.mxu0 0.0
    %472 = vmatpush2.xpose.msra.mxu0 0.0
    %473 = vmatprep.subr.mxu0 0.0
    %474 = vmatpush2.xpose.msra.mxu0 0.0
    %475 = vmatprep.subr.mxu0 0.0
    %476 = vmatpush2.xpose.msra.mxu0 0.0
    %477 = vmatprep.subr.mxu0 0.0
    %478 = vmatpush2.xpose.msra.mxu0 0.0
    %479 = vmatprep.subr.mxu0 0.0
    %480 = vmatpush2.xpose.msra.mxu0 0.0
    %481 = vmatprep.subr.mxu0 0.0
    %482 = vmatpush2.xpose.msra.mxu0 0.0
    %483 = vmatprep.subr.mxu0 0.0
    %484 = vmatpush2.xpose.msra.mxu0 0.0
    %485 = vmatprep.subr.mxu0 0.0
    %486 = vmatpush2.xpose.msra.mxu0 0.0
    %487 = vmatprep.subr.mxu0 0.0
    %488 = vmatpush2.xpose.msra.mxu0 0.0
    %489 = vmatprep.subr.mxu0 0.0
    %490 = vmatpush2.xpose.msra.mxu0 0.0
    %491 = vmatprep.mubr.f32.mxu0 %v313
    %492 = vmatmul.mubr.f32.gmra.mxu0 %v312
    %v493 = vpop.f32.mrf.mxu0
    %v494 = vadd.f32 %v424, %v493
    %v495 = vpop.f32.mrf.mxu0
    %496 = vdwg.mxu0
    %497 = vmatprep.subr.mxu0 0.0
    %498 = vmatpush1.xpose.msra.mxu0 0.0
    %499 = vmatprep.subr.mxu0 0.0
    %500 = vmatpush1.xpose.msra.mxu0 0.0
    %501 = vmatprep.subr.mxu0 0.0
    %502 = vmatpush1.xpose.msra.mxu0 0.0
    %503 = vmatprep.subr.mxu0 0.0
    %504 = vmatpush1.xpose.msra.mxu0 0.0
    %505 = vmatprep.subr.mxu0 0.0
    %506 = vmatpush1.xpose.msra.mxu0 0.0
    %507 = vmatprep.subr.mxu0 0.0
    %508 = vmatpush1.xpose.msra.mxu0 0.0
    %509 = vmatprep.subr.mxu0 0.0
    %510 = vmatpush1.xpose.msra.mxu0 0.0
    %511 = vmatprep.subr.mxu0 0.0
    %512 = vmatpush1.xpose.msra.mxu0 0.0
    %513 = vmatprep.subr.mxu0 0.0
    %514 = vmatpush1.xpose.msra.mxu0 0.0
    %515 = vmatprep.subr.mxu0 0.0
    %516 = vmatpush1.xpose.msra.mxu0 0.0
    %517 = vmatprep.subr.mxu0 0.0
    %518 = vmatpush1.xpose.msra.mxu0 0.0
    %519 = vmatprep.subr.mxu0 0.0
    %520 = vmatpush1.xpose.msra.mxu0 0.0
    %521 = vmatprep.subr.mxu0 0.0
    %522 = vmatpush1.xpose.msra.mxu0 0.0
    %523 = vmatprep.subr.mxu0 0.0
    %524 = vmatpush1.xpose.msra.mxu0 0.0
    %525 = vmatprep.subr.mxu0 %v349
    %526 = vmatpush1.xpose.msra.mxu0 %v348
    %527 = vmatprep.subr.mxu0 %v337
    %528 = vmatpush1.xpose.msra.mxu0 %v336
    %529 = vmatprep.subr.mxu0 0.0
    %530 = vmatpush2.xpose.msra.mxu0 0.0
    %531 = vmatprep.subr.mxu0 0.0
    %532 = vmatpush2.xpose.msra.mxu0 0.0
    %533 = vmatprep.subr.mxu0 0.0
    %534 = vmatpush2.xpose.msra.mxu0 0.0
    %535 = vmatprep.subr.mxu0 0.0
    %536 = vmatpush2.xpose.msra.mxu0 0.0
    %537 = vmatprep.subr.mxu0 0.0
    %538 = vmatpush2.xpose.msra.mxu0 0.0
    %539 = vmatprep.subr.mxu0 0.0
    %540 = vmatpush2.xpose.msra.mxu0 0.0
    %541 = vmatprep.subr.mxu0 0.0
    %542 = vmatpush2.xpose.msra.mxu0 0.0
    %543 = vmatprep.subr.mxu0 0.0
    %544 = vmatpush2.xpose.msra.mxu0 0.0
    %545 = vmatprep.subr.mxu0 0.0
    %546 = vmatpush2.xpose.msra.mxu0 0.0
    %547 = vmatprep.subr.mxu0 0.0
    %548 = vmatpush2.xpose.msra.mxu0 0.0
    %549 = vmatprep.subr.mxu0 0.0
    %550 = vmatpush2.xpose.msra.mxu0 0.0
    %551 = vmatprep.subr.mxu0 0.0
    %552 = vmatpush2.xpose.msra.mxu0 0.0
    %553 = vmatprep.subr.mxu0 0.0
    %554 = vmatpush2.xpose.msra.mxu0 0.0
    %555 = vmatprep.subr.mxu0 0.0
    %556 = vmatpush2.xpose.msra.mxu0 0.0
    %557 = vmatprep.subr.mxu0 0.0
    %558 = vmatpush2.xpose.msra.mxu0 0.0
    %559 = vmatprep.subr.mxu0 0.0
    %560 = vmatpush2.xpose.msra.mxu0 0.0
    %561 = vmatprep.mubr.f32.mxu0 %v317
    %562 = vmatmul.mubr.f32.gmra.mxu0 %v316
    %v563 = vpop.f32.mrf.mxu0
    %v564 = vadd.f32 %v494, %v563
    %v565 = vpop.f32.mrf.mxu0
    %566 = vdwg.mxu0
    %567 = vmatprep.subr.mxu0 0.0
    %568 = vmatpush1.xpose.msra.mxu0 0.0
    %569 = vmatprep.subr.mxu0 0.0
    %570 = vmatpush1.xpose.msra.mxu0 0.0
    %571 = vmatprep.subr.mxu0 0.0
    %572 = vmatpush1.xpose.msra.mxu0 0.0
    %573 = vmatprep.subr.mxu0 0.0
    %574 = vmatpush1.xpose.msra.mxu0 0.0
    %575 = vmatprep.subr.mxu0 0.0
    %576 = vmatpush1.xpose.msra.mxu0 0.0
    %577 = vmatprep.subr.mxu0 0.0
    %578 = vmatpush1.xpose.msra.mxu0 0.0
    %579 = vmatprep.subr.mxu0 0.0
    %580 = vmatpush1.xpose.msra.mxu0 0.0
    %581 = vmatprep.subr.mxu0 0.0
    %582 = vmatpush1.xpose.msra.mxu0 0.0
    %583 = vmatprep.subr.mxu0 0.0
    %584 = vmatpush1.xpose.msra.mxu0 0.0
    %585 = vmatprep.subr.mxu0 0.0
    %586 = vmatpush1.xpose.msra.mxu0 0.0
    %587 = vmatprep.subr.mxu0 0.0
    %588 = vmatpush1.xpose.msra.mxu0 0.0
    %589 = vmatprep.subr.mxu0 0.0
    %590 = vmatpush1.xpose.msra.mxu0 0.0
    %591 = vmatprep.subr.mxu0 0.0
    %592 = vmatpush1.xpose.msra.mxu0 0.0
    %593 = vmatprep.subr.mxu0 0.0
    %594 = vmatpush1.xpose.msra.mxu0 0.0
    %595 = vmatprep.subr.mxu0 %v351
    %596 = vmatpush1.xpose.msra.mxu0 %v350
    %597 = vmatprep.subr.mxu0 %v339
    %598 = vmatpush1.xpose.msra.mxu0 %v338
    %599 = vmatprep.subr.mxu0 0.0
    %600 = vmatpush2.xpose.msra.mxu0 0.0
    %601 = vmatprep.subr.mxu0 0.0
    %602 = vmatpush2.xpose.msra.mxu0 0.0
    %603 = vmatprep.subr.mxu0 0.0
    %604 = vmatpush2.xpose.msra.mxu0 0.0
    %605 = vmatprep.subr.mxu0 0.0
    %606 = vmatpush2.xpose.msra.mxu0 0.0
    %607 = vmatprep.subr.mxu0 0.0
    %608 = vmatpush2.xpose.msra.mxu0 0.0
    %609 = vmatprep.subr.mxu0 0.0
    %610 = vmatpush2.xpose.msra.mxu0 0.0
    %611 = vmatprep.subr.mxu0 0.0
    %612 = vmatpush2.xpose.msra.mxu0 0.0
    %613 = vmatprep.subr.mxu0 0.0
    %614 = vmatpush2.xpose.msra.mxu0 0.0
    %615 = vmatprep.subr.mxu0 0.0
    %616 = vmatpush2.xpose.msra.mxu0 0.0
    %617 = vmatprep.subr.mxu0 0.0
    %618 = vmatpush2.xpose.msra.mxu0 0.0
    %619 = vmatprep.subr.mxu0 0.0
    %620 = vmatpush2.xpose.msra.mxu0 0.0
    %621 = vmatprep.subr.mxu0 0.0
    %622 = vmatpush2.xpose.msra.mxu0 0.0
    %623 = vmatprep.subr.mxu0 0.0
    %624 = vmatpush2.xpose.msra.mxu0 0.0
    %625 = vmatprep.subr.mxu0 0.0
    %626 = vmatpush2.xpose.msra.mxu0 0.0
    %627 = vmatprep.subr.mxu0 0.0
    %628 = vmatpush2.xpose.msra.mxu0 0.0
    %629 = vmatprep.subr.mxu0 0.0
    %630 = vmatpush2.xpose.msra.mxu0 0.0
    %631 = vmatprep.mubr.f32.mxu0 %v321
    %632 = vmatmul.mubr.f32.gmra.mxu0 %v320
    %v633 = vpop.f32.mrf.mxu0
    %v634 = vadd.f32 %v564, %v633
    %v635 = vpop.f32.mrf.mxu0
    %636 = vdwg.mxu0
    %637 = vmatprep.subr.mxu0 0.0
    %638 = vmatpush1.xpose.msra.mxu0 0.0
    %639 = vmatprep.subr.mxu0 0.0
    %640 = vmatpush1.xpose.msra.mxu0 0.0
    %641 = vmatprep.subr.mxu0 0.0
    %642 = vmatpush1.xpose.msra.mxu0 0.0
    %643 = vmatprep.subr.mxu0 0.0
    %644 = vmatpush1.xpose.msra.mxu0 0.0
    %645 = vmatprep.subr.mxu0 0.0
    %646 = vmatpush1.xpose.msra.mxu0 0.0
    %647 = vmatprep.subr.mxu0 0.0
    %648 = vmatpush1.xpose.msra.mxu0 0.0
    %649 = vmatprep.subr.mxu0 0.0
    %650 = vmatpush1.xpose.msra.mxu0 0.0
    %651 = vmatprep.subr.mxu0 0.0
    %652 = vmatpush1.xpose.msra.mxu0 0.0
    %653 = vmatprep.subr.mxu0 0.0
    %654 = vmatpush1.xpose.msra.mxu0 0.0
    %655 = vmatprep.subr.mxu0 0.0
    %656 = vmatpush1.xpose.msra.mxu0 0.0
    %657 = vmatprep.subr.mxu0 0.0
    %658 = vmatpush1.xpose.msra.mxu0 0.0
    %659 = vmatprep.subr.mxu0 0.0
    %660 = vmatpush1.xpose.msra.mxu0 0.0
    %661 = vmatprep.subr.mxu0 0.0
    %662 = vmatpush1.xpose.msra.mxu0 0.0
    %663 = vmatprep.subr.mxu0 0.0
    %664 = vmatpush1.xpose.msra.mxu0 0.0
    %665 = vmatprep.subr.mxu0 %v353
    %666 = vmatpush1.xpose.msra.mxu0 %v352
    %667 = vmatprep.subr.mxu0 %v341
    %668 = vmatpush1.xpose.msra.mxu0 %v340
    %669 = vmatprep.subr.mxu0 0.0
    %670 = vmatpush2.xpose.msra.mxu0 0.0
    %671 = vmatprep.subr.mxu0 0.0
    %672 = vmatpush2.xpose.msra.mxu0 0.0
    %673 = vmatprep.subr.mxu0 0.0
    %674 = vmatpush2.xpose.msra.mxu0 0.0
    %675 = vmatprep.subr.mxu0 0.0
    %676 = vmatpush2.xpose.msra.mxu0 0.0
    %677 = vmatprep.subr.mxu0 0.0
    %678 = vmatpush2.xpose.msra.mxu0 0.0
    %679 = vmatprep.subr.mxu0 0.0
    %680 = vmatpush2.xpose.msra.mxu0 0.0
    %681 = vmatprep.subr.mxu0 0.0
    %682 = vmatpush2.xpose.msra.mxu0 0.0
    %683 = vmatprep.subr.mxu0 0.0
    %684 = vmatpush2.xpose.msra.mxu0 0.0
    %685 = vmatprep.subr.mxu0 0.0
    %686 = vmatpush2.xpose.msra.mxu0 0.0
    %687 = vmatprep.subr.mxu0 0.0
    %688 = vmatpush2.xpose.msra.mxu0 0.0
    %689 = vmatprep.subr.mxu0 0.0
    %690 = vmatpush2.xpose.msra.mxu0 0.0
    %691 = vmatprep.subr.mxu0 0.0
    %692 = vmatpush2.xpose.msra.mxu0 0.0
    %693 = vmatprep.subr.mxu0 0.0
    %694 = vmatpush2.xpose.msra.mxu0 0.0
    %695 = vmatprep.subr.mxu0 0.0
    %696 = vmatpush2.xpose.msra.mxu0 0.0
    %697 = vmatprep.subr.mxu0 0.0
    %698 = vmatpush2.xpose.msra.mxu0 0.0
    %699 = vmatprep.subr.mxu0 0.0
    %700 = vmatpush2.xpose.msra.mxu0 0.0
    %701 = vmatprep.mubr.f32.mxu0 %v325
    %702 = vmatmul.mubr.f32.gmra.mxu0 %v324
    %v703 = vpop.f32.mrf.mxu0
    %v704 = vadd.f32 %v634, %v703
    %v705 = vpop.f32.mrf.mxu0
    %706 = vdwg.mxu0
    %707 = vmatprep.subr.mxu0 0.0
    %708 = vmatpush1.xpose.msra.mxu0 0.0
    %709 = vmatprep.subr.mxu0 0.0
    %710 = vmatpush1.xpose.msra.mxu0 0.0
    %711 = vmatprep.subr.mxu0 0.0
    %712 = vmatpush1.xpose.msra.mxu0 0.0
    %713 = vmatprep.subr.mxu0 0.0
    %714 = vmatpush1.xpose.msra.mxu0 0.0
    %715 = vmatprep.subr.mxu0 0.0
    %716 = vmatpush1.xpose.msra.mxu0 0.0
    %717 = vmatprep.subr.mxu0 0.0
    %718 = vmatpush1.xpose.msra.mxu0 0.0
    %719 = vmatprep.subr.mxu0 0.0
    %720 = vmatpush1.xpose.msra.mxu0 0.0
    %721 = vmatprep.subr.mxu0 0.0
    %722 = vmatpush1.xpose.msra.mxu0 0.0
    %723 = vmatprep.subr.mxu0 0.0
    %724 = vmatpush1.xpose.msra.mxu0 0.0
    %725 = vmatprep.subr.mxu0 0.0
    %726 = vmatpush1.xpose.msra.mxu0 0.0
    %727 = vmatprep.subr.mxu0 0.0
    %728 = vmatpush1.xpose.msra.mxu0 0.0
    %729 = vmatprep.subr.mxu0 0.0
    %730 = vmatpush1.xpose.msra.mxu0 0.0
    %731 = vmatprep.subr.mxu0 0.0
    %732 = vmatpush1.xpose.msra.mxu0 0.0
    %733 = vmatprep.subr.mxu0 0.0
    %734 = vmatpush1.xpose.msra.mxu0 0.0
    %735 = vmatprep.subr.mxu0 %v355
    %736 = vmatpush1.xpose.msra.mxu0 %v354
    %737 = vmatprep.subr.mxu0 %v343
    %738 = vmatpush1.xpose.msra.mxu0 %v342
    %739 = vmatprep.subr.mxu0 0.0
    %740 = vmatpush2.xpose.msra.mxu0 0.0
    %741 = vmatprep.subr.mxu0 0.0
    %742 = vmatpush2.xpose.msra.mxu0 0.0
    %743 = vmatprep.subr.mxu0 0.0
    %744 = vmatpush2.xpose.msra.mxu0 0.0
    %745 = vmatprep.subr.mxu0 0.0
    %746 = vmatpush2.xpose.msra.mxu0 0.0
    %747 = vmatprep.subr.mxu0 0.0
    %748 = vmatpush2.xpose.msra.mxu0 0.0
    %749 = vmatprep.subr.mxu0 0.0
    %750 = vmatpush2.xpose.msra.mxu0 0.0
    %751 = vmatprep.subr.mxu0 0.0
    %752 = vmatpush2.xpose.msra.mxu0 0.0
    %753 = vmatprep.subr.mxu0 0.0
    %754 = vmatpush2.xpose.msra.mxu0 0.0
    %755 = vmatprep.subr.mxu0 0.0
    %756 = vmatpush2.xpose.msra.mxu0 0.0
    %757 = vmatprep.subr.mxu0 0.0
    %758 = vmatpush2.xpose.msra.mxu0 0.0
    %759 = vmatprep.subr.mxu0 0.0
    %760 = vmatpush2.xpose.msra.mxu0 0.0
    %761 = vmatprep.subr.mxu0 0.0
    %762 = vmatpush2.xpose.msra.mxu0 0.0
    %763 = vmatprep.subr.mxu0 0.0
    %764 = vmatpush2.xpose.msra.mxu0 0.0
    %765 = vmatprep.subr.mxu0 0.0
    %766 = vmatpush2.xpose.msra.mxu0 0.0
    %767 = vmatprep.subr.mxu0 0.0
    %768 = vmatpush2.xpose.msra.mxu0 0.0
    %769 = vmatprep.subr.mxu0 0.0
    %770 = vmatpush2.xpose.msra.mxu0 0.0
    %771 = vmatprep.mubr.f32.mxu0 %v329
    %772 = vmatmul.mubr.f32.gmra.mxu0 %v328
    %v773 = vpop.f32.mrf.mxu0
    %v774 = vadd.f32 %v704, %v773
    %v775 = vpop.f32.mrf.mxu0
    %776 = vdwg.mxu0
    %vm777 = vcmask 73728
    %v778 = vsel %vm777, %v774, -inf
    %779 = vmax.xlane.f32.xlu0 %v778
    %v780 = vpop.xlane.xlu0 %779
    %v781 = vsub.f32 %v774, %v780
    %v782 = vmul.f32 %v781, 1.442695
    %v783 = vpow.pop %v782
    %v784 = vsel %vm777, %v783, 0.0
    %785 = vadd.xlane.f32.xlu0 %v784
    %v786 = vpop.xlane.xlu0 %785
    %v787 = vlog2.pop %v786
    %v788 = vmul.f32 %v787, 0.6931472
    %v789 = vadd.f32 %v788, %v780
    %v790 = vsub.f32 %v774, %v789
    %v791 = vld [vmem:[%s6] sm:$0x1]
    %v792 = vmul.f32 %v791, %v790
    %v793 = vsel %vm777, %v792, 0.0
    %794 = vadd.xlane.f32.xlu0 %v793
    %v795 = vpop.xlane.xlu0 %794
    %v796 = vsub.f32 0.0, %v795
    %v799 = vrot.slane %v307, 1
    %v800 = vrot.slane %v309, 1
    %v803 = vrot.slane %v307, 2
    %v804 = vrot.slane %v309, 2
    %v807 = vrot.slane %v307, 3
    %v808 = vrot.slane %v309, 3
    %v811 = vrot.slane %v307, 4
    %v812 = vrot.slane %v309, 4
    %v815 = vrot.slane %v307, 5
    %v816 = vrot.slane %v309, 5
    %819 = vmatprep.subr.mxu0 0.0
    %820 = vmatpush1.xpose.msra.mxu0 0.0
    %821 = vmatprep.subr.mxu0 0.0
    %822 = vmatpush1.xpose.msra.mxu0 0.0
    %823 = vmatprep.subr.mxu0 0.0
    %824 = vmatpush1.xpose.msra.mxu0 0.0
    %825 = vmatprep.subr.mxu0 0.0
    %826 = vmatpush1.xpose.msra.mxu0 0.0
    %827 = vmatprep.subr.mxu0 0.0
    %828 = vmatpush1.xpose.msra.mxu0 0.0
    %829 = vmatprep.subr.mxu0 0.0
    %830 = vmatpush1.xpose.msra.mxu0 0.0
    %831 = vmatprep.subr.mxu0 0.0
    %832 = vmatpush1.xpose.msra.mxu0 0.0
    %833 = vmatprep.subr.mxu0 0.0
    %834 = vmatpush1.xpose.msra.mxu0 0.0
    %835 = vmatprep.subr.mxu0 0.0
    %836 = vmatpush1.xpose.msra.mxu0 0.0
    %837 = vmatprep.subr.mxu0 0.0
    %838 = vmatpush1.xpose.msra.mxu0 0.0
    %839 = vmatprep.subr.mxu0 0.0
    %840 = vmatpush1.xpose.msra.mxu0 0.0
    %841 = vmatprep.subr.mxu0 0.0
    %842 = vmatpush1.xpose.msra.mxu0 0.0
    %843 = vmatprep.subr.mxu0 0.0
    %844 = vmatpush1.xpose.msra.mxu0 0.0
    %845 = vmatprep.subr.mxu0 0.0
    %846 = vmatpush1.xpose.msra.mxu0 0.0
    %847 = vmatprep.subr.mxu0 %v345
    %848 = vmatpush1.xpose.msra.mxu0 %v344
    %849 = vmatprep.subr.mxu0 %v333
    %850 = vmatpush1.xpose.msra.mxu0 %v332
    %851 = vmatprep.subr.mxu0 0.0
    %852 = vmatpush2.xpose.msra.mxu0 0.0
    %853 = vmatprep.subr.mxu0 0.0
    %854 = vmatpush2.xpose.msra.mxu0 0.0
    %855 = vmatprep.subr.mxu0 0.0
    %856 = vmatpush2.xpose.msra.mxu0 0.0
    %857 = vmatprep.subr.mxu0 0.0
    %858 = vmatpush2.xpose.msra.mxu0 0.0
    %859 = vmatprep.subr.mxu0 0.0
    %860 = vmatpush2.xpose.msra.mxu0 0.0
    %861 = vmatprep.subr.mxu0 0.0
    %862 = vmatpush2.xpose.msra.mxu0 0.0
    %863 = vmatprep.subr.mxu0 0.0
    %864 = vmatpush2.xpose.msra.mxu0 0.0
    %865 = vmatprep.subr.mxu0 0.0
    %866 = vmatpush2.xpose.msra.mxu0 0.0
    %867 = vmatprep.subr.mxu0 0.0
    %868 = vmatpush2.xpose.msra.mxu0 0.0
    %869 = vmatprep.subr.mxu0 0.0
    %870 = vmatpush2.xpose.msra.mxu0 0.0
    %871 = vmatprep.subr.mxu0 0.0
    %872 = vmatpush2.xpose.msra.mxu0 0.0
    %873 = vmatprep.subr.mxu0 0.0
    %874 = vmatpush2.xpose.msra.mxu0 0.0
    %875 = vmatprep.subr.mxu0 0.0
    %876 = vmatpush2.xpose.msra.mxu0 0.0
    %877 = vmatprep.subr.mxu0 0.0
    %878 = vmatpush2.xpose.msra.mxu0 0.0
    %879 = vmatprep.subr.mxu0 0.0
    %880 = vmatpush2.xpose.msra.mxu0 0.0
    %881 = vmatprep.subr.mxu0 0.0
    %882 = vmatpush2.xpose.msra.mxu0 0.0
    %883 = vmatprep.mubr.f32.mxu0 %v309
    %884 = vmatmul.mubr.f32.gmra.mxu0 %v307
    %v885 = vpop.f32.mrf.mxu0
    %v886 = vadd.f32 %v356, %v885
    %v887 = vpop.f32.mrf.mxu0
    %888 = vdwg.mxu0
    %889 = vmatprep.subr.mxu0 0.0
    %890 = vmatpush1.xpose.msra.mxu0 0.0
    %891 = vmatprep.subr.mxu0 0.0
    %892 = vmatpush1.xpose.msra.mxu0 0.0
    %893 = vmatprep.subr.mxu0 0.0
    %894 = vmatpush1.xpose.msra.mxu0 0.0
    %895 = vmatprep.subr.mxu0 0.0
    %896 = vmatpush1.xpose.msra.mxu0 0.0
    %897 = vmatprep.subr.mxu0 0.0
    %898 = vmatpush1.xpose.msra.mxu0 0.0
    %899 = vmatprep.subr.mxu0 0.0
    %900 = vmatpush1.xpose.msra.mxu0 0.0
    %901 = vmatprep.subr.mxu0 0.0
    %902 = vmatpush1.xpose.msra.mxu0 0.0
    %903 = vmatprep.subr.mxu0 0.0
    %904 = vmatpush1.xpose.msra.mxu0 0.0
    %905 = vmatprep.subr.mxu0 0.0
    %906 = vmatpush1.xpose.msra.mxu0 0.0
    %907 = vmatprep.subr.mxu0 0.0
    %908 = vmatpush1.xpose.msra.mxu0 0.0
    %909 = vmatprep.subr.mxu0 0.0
    %910 = vmatpush1.xpose.msra.mxu0 0.0
    %911 = vmatprep.subr.mxu0 0.0
    %912 = vmatpush1.xpose.msra.mxu0 0.0
    %913 = vmatprep.subr.mxu0 0.0
    %914 = vmatpush1.xpose.msra.mxu0 0.0
    %915 = vmatprep.subr.mxu0 0.0
    %916 = vmatpush1.xpose.msra.mxu0 0.0
    %917 = vmatprep.subr.mxu0 %v347
    %918 = vmatpush1.xpose.msra.mxu0 %v346
    %919 = vmatprep.subr.mxu0 %v335
    %920 = vmatpush1.xpose.msra.mxu0 %v334
    %921 = vmatprep.subr.mxu0 0.0
    %922 = vmatpush2.xpose.msra.mxu0 0.0
    %923 = vmatprep.subr.mxu0 0.0
    %924 = vmatpush2.xpose.msra.mxu0 0.0
    %925 = vmatprep.subr.mxu0 0.0
    %926 = vmatpush2.xpose.msra.mxu0 0.0
    %927 = vmatprep.subr.mxu0 0.0
    %928 = vmatpush2.xpose.msra.mxu0 0.0
    %929 = vmatprep.subr.mxu0 0.0
    %930 = vmatpush2.xpose.msra.mxu0 0.0
    %931 = vmatprep.subr.mxu0 0.0
    %932 = vmatpush2.xpose.msra.mxu0 0.0
    %933 = vmatprep.subr.mxu0 0.0
    %934 = vmatpush2.xpose.msra.mxu0 0.0
    %935 = vmatprep.subr.mxu0 0.0
    %936 = vmatpush2.xpose.msra.mxu0 0.0
    %937 = vmatprep.subr.mxu0 0.0
    %938 = vmatpush2.xpose.msra.mxu0 0.0
    %939 = vmatprep.subr.mxu0 0.0
    %940 = vmatpush2.xpose.msra.mxu0 0.0
    %941 = vmatprep.subr.mxu0 0.0
    %942 = vmatpush2.xpose.msra.mxu0 0.0
    %943 = vmatprep.subr.mxu0 0.0
    %944 = vmatpush2.xpose.msra.mxu0 0.0
    %945 = vmatprep.subr.mxu0 0.0
    %946 = vmatpush2.xpose.msra.mxu0 0.0
    %947 = vmatprep.subr.mxu0 0.0
    %948 = vmatpush2.xpose.msra.mxu0 0.0
    %949 = vmatprep.subr.mxu0 0.0
    %950 = vmatpush2.xpose.msra.mxu0 0.0
    %951 = vmatprep.subr.mxu0 0.0
    %952 = vmatpush2.xpose.msra.mxu0 0.0
    %953 = vmatprep.mubr.f32.mxu0 %v800
    %954 = vmatmul.mubr.f32.gmra.mxu0 %v799
    %v955 = vpop.f32.mrf.mxu0
    %v956 = vadd.f32 %v886, %v955
    %v957 = vpop.f32.mrf.mxu0
    %958 = vdwg.mxu0
    %959 = vmatprep.subr.mxu0 0.0
    %960 = vmatpush1.xpose.msra.mxu0 0.0
    %961 = vmatprep.subr.mxu0 0.0
    %962 = vmatpush1.xpose.msra.mxu0 0.0
    %963 = vmatprep.subr.mxu0 0.0
    %964 = vmatpush1.xpose.msra.mxu0 0.0
    %965 = vmatprep.subr.mxu0 0.0
    %966 = vmatpush1.xpose.msra.mxu0 0.0
    %967 = vmatprep.subr.mxu0 0.0
    %968 = vmatpush1.xpose.msra.mxu0 0.0
    %969 = vmatprep.subr.mxu0 0.0
    %970 = vmatpush1.xpose.msra.mxu0 0.0
    %971 = vmatprep.subr.mxu0 0.0
    %972 = vmatpush1.xpose.msra.mxu0 0.0
    %973 = vmatprep.subr.mxu0 0.0
    %974 = vmatpush1.xpose.msra.mxu0 0.0
    %975 = vmatprep.subr.mxu0 0.0
    %976 = vmatpush1.xpose.msra.mxu0 0.0
    %977 = vmatprep.subr.mxu0 0.0
    %978 = vmatpush1.xpose.msra.mxu0 0.0
    %979 = vmatprep.subr.mxu0 0.0
    %980 = vmatpush1.xpose.msra.mxu0 0.0
    %981 = vmatprep.subr.mxu0 0.0
    %982 = vmatpush1.xpose.msra.mxu0 0.0
    %983 = vmatprep.subr.mxu0 0.0
    %984 = vmatpush1.xpose.msra.mxu0 0.0
    %985 = vmatprep.subr.mxu0 0.0
    %986 = vmatpush1.xpose.msra.mxu0 0.0
    %987 = vmatprep.subr.mxu0 %v349
    %988 = vmatpush1.xpose.msra.mxu0 %v348
    %989 = vmatprep.subr.mxu0 %v337
    %990 = vmatpush1.xpose.msra.mxu0 %v336
    %991 = vmatprep.subr.mxu0 0.0
    %992 = vmatpush2.xpose.msra.mxu0 0.0
    %993 = vmatprep.subr.mxu0 0.0
    %994 = vmatpush2.xpose.msra.mxu0 0.0
    %995 = vmatprep.subr.mxu0 0.0
    %996 = vmatpush2.xpose.msra.mxu0 0.0
    %997 = vmatprep.subr.mxu0 0.0
    %998 = vmatpush2.xpose.msra.mxu0 0.0
    %999 = vmatprep.subr.mxu0 0.0
    %1000 = vmatpush2.xpose.msra.mxu0 0.0
    %1001 = vmatprep.subr.mxu0 0.0
    %1002 = vmatpush2.xpose.msra.mxu0 0.0
    %1003 = vmatprep.subr.mxu0 0.0
    %1004 = vmatpush2.xpose.msra.mxu0 0.0
    %1005 = vmatprep.subr.mxu0 0.0
    %1006 = vmatpush2.xpose.msra.mxu0 0.0
    %1007 = vmatprep.subr.mxu0 0.0
    %1008 = vmatpush2.xpose.msra.mxu0 0.0
    %1009 = vmatprep.subr.mxu0 0.0
    %1010 = vmatpush2.xpose.msra.mxu0 0.0
    %1011 = vmatprep.subr.mxu0 0.0
    %1012 = vmatpush2.xpose.msra.mxu0 0.0
    %1013 = vmatprep.subr.mxu0 0.0
    %1014 = vmatpush2.xpose.msra.mxu0 0.0
    %1015 = vmatprep.subr.mxu0 0.0
    %1016 = vmatpush2.xpose.msra.mxu0 0.0
    %1017 = vmatprep.subr.mxu0 0.0
    %1018 = vmatpush2.xpose.msra.mxu0 0.0
    %1019 = vmatprep.subr.mxu0 0.0
    %1020 = vmatpush2.xpose.msra.mxu0 0.0
    %1021 = vmatprep.subr.mxu0 0.0
    %1022 = vmatpush2.xpose.msra.mxu0 0.0
    %1023 = vmatprep.mubr.f32.mxu0 %v804
    %1024 = vmatmul.mubr.f32.gmra.mxu0 %v803
    %v1025 = vpop.f32.mrf.mxu0
    %v1026 = vadd.f32 %v956, %v1025
    %v1027 = vpop.f32.mrf.mxu0
    %1028 = vdwg.mxu0
    %1029 = vmatprep.subr.mxu0 0.0
    %1030 = vmatpush1.xpose.msra.mxu0 0.0
    %1031 = vmatprep.subr.mxu0 0.0
    %1032 = vmatpush1.xpose.msra.mxu0 0.0
    %1033 = vmatprep.subr.mxu0 0.0
    %1034 = vmatpush1.xpose.msra.mxu0 0.0
    %1035 = vmatprep.subr.mxu0 0.0
    %1036 = vmatpush1.xpose.msra.mxu0 0.0
    %1037 = vmatprep.subr.mxu0 0.0
    %1038 = vmatpush1.xpose.msra.mxu0 0.0
    %1039 = vmatprep.subr.mxu0 0.0
    %1040 = vmatpush1.xpose.msra.mxu0 0.0
    %1041 = vmatprep.subr.mxu0 0.0
    %1042 = vmatpush1.xpose.msra.mxu0 0.0
    %1043 = vmatprep.subr.mxu0 0.0
    %1044 = vmatpush1.xpose.msra.mxu0 0.0
    %1045 = vmatprep.subr.mxu0 0.0
    %1046 = vmatpush1.xpose.msra.mxu0 0.0
    %1047 = vmatprep.subr.mxu0 0.0
    %1048 = vmatpush1.xpose.msra.mxu0 0.0
    %1049 = vmatprep.subr.mxu0 0.0
    %1050 = vmatpush1.xpose.msra.mxu0 0.0
    %1051 = vmatprep.subr.mxu0 0.0
    %1052 = vmatpush1.xpose.msra.mxu0 0.0
    %1053 = vmatprep.subr.mxu0 0.0
    %1054 = vmatpush1.xpose.msra.mxu0 0.0
    %1055 = vmatprep.subr.mxu0 0.0
    %1056 = vmatpush1.xpose.msra.mxu0 0.0
    %1057 = vmatprep.subr.mxu0 %v351
    %1058 = vmatpush1.xpose.msra.mxu0 %v350
    %1059 = vmatprep.subr.mxu0 %v339
    %1060 = vmatpush1.xpose.msra.mxu0 %v338
    %1061 = vmatprep.subr.mxu0 0.0
    %1062 = vmatpush2.xpose.msra.mxu0 0.0
    %1063 = vmatprep.subr.mxu0 0.0
    %1064 = vmatpush2.xpose.msra.mxu0 0.0
    %1065 = vmatprep.subr.mxu0 0.0
    %1066 = vmatpush2.xpose.msra.mxu0 0.0
    %1067 = vmatprep.subr.mxu0 0.0
    %1068 = vmatpush2.xpose.msra.mxu0 0.0
    %1069 = vmatprep.subr.mxu0 0.0
    %1070 = vmatpush2.xpose.msra.mxu0 0.0
    %1071 = vmatprep.subr.mxu0 0.0
    %1072 = vmatpush2.xpose.msra.mxu0 0.0
    %1073 = vmatprep.subr.mxu0 0.0
    %1074 = vmatpush2.xpose.msra.mxu0 0.0
    %1075 = vmatprep.subr.mxu0 0.0
    %1076 = vmatpush2.xpose.msra.mxu0 0.0
    %1077 = vmatprep.subr.mxu0 0.0
    %1078 = vmatpush2.xpose.msra.mxu0 0.0
    %1079 = vmatprep.subr.mxu0 0.0
    %1080 = vmatpush2.xpose.msra.mxu0 0.0
    %1081 = vmatprep.subr.mxu0 0.0
    %1082 = vmatpush2.xpose.msra.mxu0 0.0
    %1083 = vmatprep.subr.mxu0 0.0
    %1084 = vmatpush2.xpose.msra.mxu0 0.0
    %1085 = vmatprep.subr.mxu0 0.0
    %1086 = vmatpush2.xpose.msra.mxu0 0.0
    %1087 = vmatprep.subr.mxu0 0.0
    %1088 = vmatpush2.xpose.msra.mxu0 0.0
    %1089 = vmatprep.subr.mxu0 0.0
    %1090 = vmatpush2.xpose.msra.mxu0 0.0
    %1091 = vmatprep.subr.mxu0 0.0
    %1092 = vmatpush2.xpose.msra.mxu0 0.0
    %1093 = vmatprep.mubr.f32.mxu0 %v808
    %1094 = vmatmul.mubr.f32.gmra.mxu0 %v807
    %v1095 = vpop.f32.mrf.mxu0
    %v1096 = vadd.f32 %v1026, %v1095
    %v1097 = vpop.f32.mrf.mxu0
    %1098 = vdwg.mxu0
    %1099 = vmatprep.subr.mxu0 0.0
    %1100 = vmatpush1.xpose.msra.mxu0 0.0
    %1101 = vmatprep.subr.mxu0 0.0
    %1102 = vmatpush1.xpose.msra.mxu0 0.0
    %1103 = vmatprep.subr.mxu0 0.0
    %1104 = vmatpush1.xpose.msra.mxu0 0.0
    %1105 = vmatprep.subr.mxu0 0.0
    %1106 = vmatpush1.xpose.msra.mxu0 0.0
    %1107 = vmatprep.subr.mxu0 0.0
    %1108 = vmatpush1.xpose.msra.mxu0 0.0
    %1109 = vmatprep.subr.mxu0 0.0
    %1110 = vmatpush1.xpose.msra.mxu0 0.0
    %1111 = vmatprep.subr.mxu0 0.0
    %1112 = vmatpush1.xpose.msra.mxu0 0.0
    %1113 = vmatprep.subr.mxu0 0.0
    %1114 = vmatpush1.xpose.msra.mxu0 0.0
    %1115 = vmatprep.subr.mxu0 0.0
    %1116 = vmatpush1.xpose.msra.mxu0 0.0
    %1117 = vmatprep.subr.mxu0 0.0
    %1118 = vmatpush1.xpose.msra.mxu0 0.0
    %1119 = vmatprep.subr.mxu0 0.0
    %1120 = vmatpush1.xpose.msra.mxu0 0.0
    %1121 = vmatprep.subr.mxu0 0.0
    %1122 = vmatpush1.xpose.msra.mxu0 0.0
    %1123 = vmatprep.subr.mxu0 0.0
    %1124 = vmatpush1.xpose.msra.mxu0 0.0
    %1125 = vmatprep.subr.mxu0 0.0
    %1126 = vmatpush1.xpose.msra.mxu0 0.0
    %1127 = vmatprep.subr.mxu0 %v353
    %1128 = vmatpush1.xpose.msra.mxu0 %v352
    %1129 = vmatprep.subr.mxu0 %v341
    %1130 = vmatpush1.xpose.msra.mxu0 %v340
    %1131 = vmatprep.subr.mxu0 0.0
    %1132 = vmatpush2.xpose.msra.mxu0 0.0
    %1133 = vmatprep.subr.mxu0 0.0
    %1134 = vmatpush2.xpose.msra.mxu0 0.0
    %1135 = vmatprep.subr.mxu0 0.0
    %1136 = vmatpush2.xpose.msra.mxu0 0.0
    %1137 = vmatprep.subr.mxu0 0.0
    %1138 = vmatpush2.xpose.msra.mxu0 0.0
    %1139 = vmatprep.subr.mxu0 0.0
    %1140 = vmatpush2.xpose.msra.mxu0 0.0
    %1141 = vmatprep.subr.mxu0 0.0
    %1142 = vmatpush2.xpose.msra.mxu0 0.0
    %1143 = vmatprep.subr.mxu0 0.0
    %1144 = vmatpush2.xpose.msra.mxu0 0.0
    %1145 = vmatprep.subr.mxu0 0.0
    %1146 = vmatpush2.xpose.msra.mxu0 0.0
    %1147 = vmatprep.subr.mxu0 0.0
    %1148 = vmatpush2.xpose.msra.mxu0 0.0
    %1149 = vmatprep.subr.mxu0 0.0
    %1150 = vmatpush2.xpose.msra.mxu0 0.0
    %1151 = vmatprep.subr.mxu0 0.0
    %1152 = vmatpush2.xpose.msra.mxu0 0.0
    %1153 = vmatprep.subr.mxu0 0.0
    %1154 = vmatpush2.xpose.msra.mxu0 0.0
    %1155 = vmatprep.subr.mxu0 0.0
    %1156 = vmatpush2.xpose.msra.mxu0 0.0
    %1157 = vmatprep.subr.mxu0 0.0
    %1158 = vmatpush2.xpose.msra.mxu0 0.0
    %1159 = vmatprep.subr.mxu0 0.0
    %1160 = vmatpush2.xpose.msra.mxu0 0.0
    %1161 = vmatprep.subr.mxu0 0.0
    %1162 = vmatpush2.xpose.msra.mxu0 0.0
    %1163 = vmatprep.mubr.f32.mxu0 %v812
    %1164 = vmatmul.mubr.f32.gmra.mxu0 %v811
    %v1165 = vpop.f32.mrf.mxu0
    %v1166 = vadd.f32 %v1096, %v1165
    %v1167 = vpop.f32.mrf.mxu0
    %1168 = vdwg.mxu0
    %1169 = vmatprep.subr.mxu0 0.0
    %1170 = vmatpush1.xpose.msra.mxu0 0.0
    %1171 = vmatprep.subr.mxu0 0.0
    %1172 = vmatpush1.xpose.msra.mxu0 0.0
    %1173 = vmatprep.subr.mxu0 0.0
    %1174 = vmatpush1.xpose.msra.mxu0 0.0
    %1175 = vmatprep.subr.mxu0 0.0
    %1176 = vmatpush1.xpose.msra.mxu0 0.0
    %1177 = vmatprep.subr.mxu0 0.0
    %1178 = vmatpush1.xpose.msra.mxu0 0.0
    %1179 = vmatprep.subr.mxu0 0.0
    %1180 = vmatpush1.xpose.msra.mxu0 0.0
    %1181 = vmatprep.subr.mxu0 0.0
    %1182 = vmatpush1.xpose.msra.mxu0 0.0
    %1183 = vmatprep.subr.mxu0 0.0
    %1184 = vmatpush1.xpose.msra.mxu0 0.0
    %1185 = vmatprep.subr.mxu0 0.0
    %1186 = vmatpush1.xpose.msra.mxu0 0.0
    %1187 = vmatprep.subr.mxu0 0.0
    %1188 = vmatpush1.xpose.msra.mxu0 0.0
    %1189 = vmatprep.subr.mxu0 0.0
    %1190 = vmatpush1.xpose.msra.mxu0 0.0
    %1191 = vmatprep.subr.mxu0 0.0
    %1192 = vmatpush1.xpose.msra.mxu0 0.0
    %1193 = vmatprep.subr.mxu0 0.0
    %1194 = vmatpush1.xpose.msra.mxu0 0.0
    %1195 = vmatprep.subr.mxu0 0.0
    %1196 = vmatpush1.xpose.msra.mxu0 0.0
    %1197 = vmatprep.subr.mxu0 %v355
    %1198 = vmatpush1.xpose.msra.mxu0 %v354
    %1199 = vmatprep.subr.mxu0 %v343
    %1200 = vmatpush1.xpose.msra.mxu0 %v342
    %1201 = vmatprep.subr.mxu0 0.0
    %1202 = vmatpush2.xpose.msra.mxu0 0.0
    %1203 = vmatprep.subr.mxu0 0.0
    %1204 = vmatpush2.xpose.msra.mxu0 0.0
    %1205 = vmatprep.subr.mxu0 0.0
    %1206 = vmatpush2.xpose.msra.mxu0 0.0
    %1207 = vmatprep.subr.mxu0 0.0
    %1208 = vmatpush2.xpose.msra.mxu0 0.0
    %1209 = vmatprep.subr.mxu0 0.0
    %1210 = vmatpush2.xpose.msra.mxu0 0.0
    %1211 = vmatprep.subr.mxu0 0.0
    %1212 = vmatpush2.xpose.msra.mxu0 0.0
    %1213 = vmatprep.subr.mxu0 0.0
    %1214 = vmatpush2.xpose.msra.mxu0 0.0
    %1215 = vmatprep.subr.mxu0 0.0
    %1216 = vmatpush2.xpose.msra.mxu0 0.0
    %1217 = vmatprep.subr.mxu0 0.0
    %1218 = vmatpush2.xpose.msra.mxu0 0.0
    %1219 = vmatprep.subr.mxu0 0.0
    %1220 = vmatpush2.xpose.msra.mxu0 0.0
    %1221 = vmatprep.subr.mxu0 0.0
    %1222 = vmatpush2.xpose.msra.mxu0 0.0
    %1223 = vmatprep.subr.mxu0 0.0
    %1224 = vmatpush2.xpose.msra.mxu0 0.0
    %1225 = vmatprep.subr.mxu0 0.0
    %1226 = vmatpush2.xpose.msra.mxu0 0.0
    %1227 = vmatprep.subr.mxu0 0.0
    %1228 = vmatpush2.xpose.msra.mxu0 0.0
    %1229 = vmatprep.subr.mxu0 0.0
    %1230 = vmatpush2.xpose.msra.mxu0 0.0
    %1231 = vmatprep.subr.mxu0 0.0
    %1232 = vmatpush2.xpose.msra.mxu0 0.0
    %1233 = vmatprep.mubr.f32.mxu0 %v816
    %1234 = vmatmul.mubr.f32.gmra.mxu0 %v815
    %v1235 = vpop.f32.mrf.mxu0
    %v1236 = vadd.f32 %v1166, %v1235
    %v1237 = vpop.f32.mrf.mxu0
    %1238 = vdwg.mxu0
    %v1239 = vsel %vm777, %v1236, -inf
    %1240 = vmax.xlane.f32.xlu0 %v1239
    %v1241 = vpop.xlane.xlu0 %1240
    %v1242 = vsub.f32 %v1236, %v1241
    %v1243 = vmul.f32 %v1242, 1.442695
    %v1244 = vpow.pop %v1243
    %v1245 = vsel %vm777, %v1244, 0.0
    %1246 = vadd.xlane.f32.xlu0 %v1245
    %v1247 = vpop.xlane.xlu0 %1246
    %v1248 = vlog2.pop %v1247
    %v1249 = vmul.f32 %v1248, 0.6931472
    %v1250 = vadd.f32 %v1249, %v1241
    %v1251 = vsub.f32 %v1236, %v1250
    %v1252 = vld [vmem:[%s6 + $0x1] sm:$0x1]
    %v1253 = vmul.f32 %v1252, %v1251
    %v1254 = vsel %vm777, %v1253, 0.0
    %1255 = vadd.xlane.f32.xlu0 %v1254
    %v1256 = vpop.xlane.xlu0 %1255
    %v1257 = vsub.f32 %v796, %v1256
    %v1258 = vmul.f32 %v1257, 0.5
    %vm1259 = vcmask 0
    %1260 = vst.msk [vmem:[#allocation2] sm:$0x1] %vm1259, %v1258
    // Predicated region
    $region30: #{torch_test_forward.1} parent=1 // pred_check
      _
    $region31: #{torch_test_forward.1} parent=1 // pred_check_branch
      %1262 = sbr.rel (0) target = $region33
    $region32: #{torch_test_forward.1} parent=1 // pred_region
      %s1264 = ssub.s32 16, 16
      %1265 = vsyncadd [#allocation3], %s1264
      %s1267 = sshll.u32 [#allocation2], 4
      %s1268 = int_to_ptr.vmem [resolvable:$true] %s1267
      %1270 = dma.vmem_to_hbm [thread:$0]  %s1268, 16, %s7, [#allocation3]
    $region33: #{torch_test_forward.1} parent=1 // pred_fallthru
      _
    // Predicated region
    $region34: #{torch_test_forward.1} parent=1 // pred_check
      _
    $region35: #{torch_test_forward.1} parent=1 // pred_check_branch
      %1272 = sbr.rel (0) target = $region37
    $region36: #{torch_test_forward.1} parent=1 // pred_region
      %1273 = dma.done [#allocation3], 16
    $region37: #{torch_test_forward.1} parent=1 // pred_fallthru
      _
    %1274 = vsyncpa [#allocation3], 1

</llo_original>
